<compile_context>
chip_gen: v5e
topology: v5e:2x2
jax: 0.10.0
libtpu: 0.0.40
codegen_flags: <defaults>
</compile_context>

<pallas_src>
import functools

import jax
import jax.numpy as jnp
import numpy as np
from jax.experimental import pallas as pl
from jax.experimental.pallas import tpu as pltpu


def dense_layer_kernel(x_ref, w_ref, b_ref, m_ref, o_ref, patch_ref, *, dims):
    """One batch element.

    x_ref:     (1, Cin, S)        flat input, S = D*H*W on the lane axis
    w_ref:     (Cout, 27*Cin)     conv taps as a single 2-D MXU tile
    b_ref:     (Cout, 1)          bias
    m_ref:     (27*Cin, S)        per-tap validity masks (conv zero padding)
    o_ref:     (1, Cin+Cout, S)   concat([x, relu(conv(x))], channel axis)
    patch_ref: (27*Cin, S)        VMEM scratch: im2col patch matrix
    """
    D, H, W = dims
    _, Cin, S = x_ref.shape
    Cout = w_ref.shape[0]

    xf = x_ref[0]  # (Cin, S)

    # im2col: tap (kd, kh, kw) of the 3x3x3 window is the flat input shifted by
    # s = (kd-1)*H*W + (kh-1)*W + (kw-1). A lane roll places x[:, p + s] at
    # lane p; the mask zeroes lanes whose true 3-D source index is out of
    # bounds (which also covers the roll wrap-around).
    for kd in range(3):
        for kh in range(3):
            for kw in range(3):
                tap = kd * 9 + kh * 3 + kw
                s = (kd - 1) * (H * W) + (kh - 1) * W + (kw - 1)
                shift = (-s) % S
                rolled = pltpu.roll(xf, shift, axis=1) if shift else xf
                rows = pl.ds(tap * Cin, Cin)
                patch_ref[rows, :] = rolled * m_ref[rows, :]

    # One fused MXU matmul: K = 27*Cin (~108), N = S (lane dense) + bias + ReLU.
    y = jnp.dot(w_ref[...], patch_ref[...], preferred_element_type=jnp.float32)
    y = jnp.maximum(y + b_ref[...].astype(jnp.float32), 0.0)

    # Channel concat as two lane-dense channel-slice stores.
    o_ref[0, :Cin, :] = xf.astype(o_ref.dtype)
    o_ref[0, Cin:, :] = y.astype(o_ref.dtype)


def dense_layer_forward(x_ncdhw, weight_oidhw, bias):
    """x: (N, Cin, D, H, W); weight: (Cout, Cin, 3, 3, 3); bias: (Cout,)."""
    N, Cin, D, H, W = x_ncdhw.shape
    Cout = weight_oidhw.shape[0]
    S = D * H * W
    K = 27 * Cin

    # Channels-first + flat spatial: pure reshape, no transpose, no pad pass.
    x_flat = x_ncdhw.reshape(N, Cin, S)

    # (Cout, Cin, 3,3,3) -> (Cout, 3,3,3, Cin) -> (Cout, 27*Cin): tap-major,
    # cin-minor K order, matching the im2col patch rows.
    w2d = jnp.transpose(weight_oidhw, (0, 2, 3, 4, 1)).reshape(Cout, K)
    b2d = bias.reshape(Cout, 1)

    # Per-tap validity masks (halo-of-1 zero padding folded into the kernel),
    # replicated per input channel to match the patch row order. Host constant.
    p = np.arange(S)
    d_i, h_i, w_i = p // (H * W), (p // W) % H, p % W
    masks = np.zeros((K, S), dtype=np.dtype(x_ncdhw.dtype))
    for kd in range(3):
        for kh in range(3):
            for kw in range(3):
                od, oh, ow = kd - 1, kh - 1, kw - 1
                valid = ((d_i + od >= 0) & (d_i + od < D)
                         & (h_i + oh >= 0) & (h_i + oh < H)
                         & (w_i + ow >= 0) & (w_i + ow < W))
                tap = kd * 9 + kh * 3 + kw
                masks[tap * Cin:(tap + 1) * Cin, :] = valid
    masks = jnp.asarray(masks)

    kernel = functools.partial(dense_layer_kernel, dims=(D, H, W))

    # TODO(synk): for large D/H/W, add a spatial (D) grid axis with a halo of 1
    # and budget double-buffered blocks against v7x's 64 MiB VMEM.
    out_flat = pl.pallas_call(
        kernel,
        out_shape=jax.ShapeDtypeStruct((N, Cin + Cout, S), x_ncdhw.dtype),
        grid=(N,),
        in_specs=[
            pl.BlockSpec((1, Cin, S), lambda n: (n, 0, 0)),
            pl.BlockSpec((Cout, K), lambda n: (0, 0)),
            pl.BlockSpec((Cout, 1), lambda n: (0, 0)),
            pl.BlockSpec((K, S), lambda n: (0, 0)),
        ],
        out_specs=pl.BlockSpec((1, Cin + Cout, S), lambda n: (n, 0, 0)),
        scratch_shapes=[pltpu.VMEM((K, S), x_ncdhw.dtype)],
        compiler_params=pltpu.CompilerParams(
            dimension_semantics=("parallel",),
            vmem_limit_bytes=64 * 1024 * 1024),
    )(x_flat, w2d, b2d, masks)

    # Back to (N, Cin+Cout, D, H, W): pure reshape, already channels-first.
    return out_flat.reshape(N, Cin + Cout, D, H, W)


def reference_forward(x_ncdhw, weight_oidhw, bias):
    y = jax.lax.conv_general_dilated(
        x_ncdhw, weight_oidhw,
        window_strides=(1, 1, 1),
        padding=((1, 1), (1, 1), (1, 1)),
        dimension_numbers=("NCDHW", "OIDHW", "NCDHW"))
    y = jnp.maximum(y + bias[None, :, None, None, None], 0.0)
    return jnp.concatenate([x_ncdhw, y], axis=1)


if __name__ == "__main__":
    N, Cin, Cout = 2, 4, 8
    D = H = W = 8

    key = jax.random.PRNGKey(0)
    kx, kw, kb = jax.random.split(key, 3)
    x = jax.random.normal(kx, (N, Cin, D, H, W), dtype=jnp.float32)
    # Deterministic synthetic parameters (nn.Conv3d(Cin, Cout, 3, padding=1)).
    weight = 0.1 * jax.random.normal(kw, (Cout, Cin, 3, 3, 3), dtype=jnp.float32)
    bias = 0.1 * jax.random.normal(kb, (Cout,), dtype=jnp.float32)

    out = jax.block_until_ready(dense_layer_forward(x, weight, bias))

    ref = jax.block_until_ready(reference_forward(x, weight, bias))
    assert out.shape == (N, Cin + Cout, D, H, W), out.shape
    if not jnp.allclose(out, ref, rtol=1e-3, atol=1e-3):
        raise AssertionError("Pallas DenseLayer output mismatch vs reference")

    print("KERNEL_OK")
</pallas_src>

<mosaic_0001>
module attributes {stable_mosaic.version = 11 : i64} {
  func.func @dense_layer_kernel(%arg0: i32, %arg1: memref<1x4x512xf32, #tpu.memory_space<vmem>>, %arg2: memref<8x108xf32, #tpu.memory_space<vmem>>, %arg3: memref<8x1xf32, #tpu.memory_space<vmem>>, %arg4: memref<108x512xf32, #tpu.memory_space<vmem>>, %arg5: memref<1x12x512xf32, #tpu.memory_space<vmem>>, %arg6: memref<108x512xf32, #tpu.memory_space<vmem>>) attributes {dimension_semantics = [#tpu.dimension_semantics<parallel>], iteration_bounds = array<i64: 2>, scalar_prefetch = 0 : i64, scratch_operands = 1 : i64, tpu.core_type = #tpu.core_type<tc>, window_params = [{transform_indices = @transform_0, window_bounds = array<i64: 1, 4, 512>}, {pipeline_mode = #tpu.pipeline_mode<synchronous>, transform_indices = @transform_1, window_bounds = array<i64: 8, 108>}, {pipeline_mode = #tpu.pipeline_mode<synchronous>, transform_indices = @transform_2, window_bounds = array<i64: 8, 1>}, {pipeline_mode = #tpu.pipeline_mode<synchronous>, transform_indices = @transform_3, window_bounds = array<i64: 108, 512>}, {transform_indices = @transform_4, window_bounds = array<i64: 1, 12, 512>}]} {
    %c0 = arith.constant 0 : index
    %c0_0 = arith.constant 0 : index
    %c0_1 = arith.constant 0 : index
    %0 = vector.load %arg1[%c0, %c0_0, %c0_1] : memref<1x4x512xf32, #tpu.memory_space<vmem>>, vector<1x4x512xf32>
    %1 = vector.shape_cast %0 : vector<1x4x512xf32> to vector<4x512xf32>
    %c73_i32 = arith.constant 73 : i32
    %2 = tpu.dynamic_rotate %1 by %c73_i32 dim 1 : vector<4x512xf32>, i32 -> vector<4x512xf32>
    %c0_2 = arith.constant 0 : index
    %c0_3 = arith.constant 0 : index
    %3 = vector.load %arg4[%c0_2, %c0_3] : memref<108x512xf32, #tpu.memory_space<vmem>>, vector<4x512xf32>
    %4 = arith.mulf %2, %3 : vector<4x512xf32>
    %c0_4 = arith.constant 0 : index
    %c0_5 = arith.constant 0 : index
    %5 = vector.load %arg6[%c0_4, %c0_5] : memref<108x512xf32, #tpu.memory_space<vmem>>, vector<4x512xf32>
    tpu.vector_store %arg6[%c0_4, %c0_5], %4 {strides = array<i32>} : memref<108x512xf32, #tpu.memory_space<vmem>>, vector<4x512xf32>,
    %c72_i32 = arith.constant 72 : i32
    %6 = tpu.dynamic_rotate %1 by %c72_i32 dim 1 : vector<4x512xf32>, i32 -> vector<4x512xf32>
    %c4 = arith.constant 4 : index
    %c0_6 = arith.constant 0 : index
    %7 = vector.load %arg4[%c4, %c0_6] : memref<108x512xf32, #tpu.memory_space<vmem>>, vector<4x512xf32>
    %8 = arith.mulf %6, %7 : vector<4x512xf32>
    %c4_7 = arith.constant 4 : index
    %c0_8 = arith.constant 0 : index
    %9 = vector.load %arg6[%c4_7, %c0_8] : memref<108x512xf32, #tpu.memory_space<vmem>>, vector<4x512xf32>
    tpu.vector_store %arg6[%c4_7, %c0_8], %8 {strides = array<i32>} : memref<108x512xf32, #tpu.memory_space<vmem>>, vector<4x512xf32>,
    %c71_i32 = arith.constant 71 : i32
    %10 = tpu.dynamic_rotate %1 by %c71_i32 dim 1 : vector<4x512xf32>, i32 -> vector<4x512xf32>
    %c8 = arith.constant 8 : index
    %c0_9 = arith.constant 0 : index
    %11 = vector.load %arg4[%c8, %c0_9] : memref<108x512xf32, #tpu.memory_space<vmem>>, vector<4x512xf32>
    %12 = arith.mulf %10, %11 : vector<4x512xf32>
    %c8_10 = arith.constant 8 : index
    %c0_11 = arith.constant 0 : index
    %13 = vector.load %arg6[%c8_10, %c0_11] : memref<108x512xf32, #tpu.memory_space<vmem>>, vector<4x512xf32>
    tpu.vector_store %arg6[%c8_10, %c0_11], %12 {strides = array<i32>} : memref<108x512xf32, #tpu.memory_space<vmem>>, vector<4x512xf32>,
    %c65_i32 = arith.constant 65 : i32
    %14 = tpu.dynamic_rotate %1 by %c65_i32 dim 1 : vector<4x512xf32>, i32 -> vector<4x512xf32>
    %c12 = arith.constant 12 : index
    %c0_12 = arith.constant 0 : index
    %15 = vector.load %arg4[%c12, %c0_12] : memref<108x512xf32, #tpu.memory_space<vmem>>, vector<4x512xf32>
    %16 = arith.mulf %14, %15 : vector<4x512xf32>
    %c12_13 = arith.constant 12 : index
    %c0_14 = arith.constant 0 : index
    %17 = vector.load %arg6[%c12_13, %c0_14] : memref<108x512xf32, #tpu.memory_space<vmem>>, vector<4x512xf32>
    tpu.vector_store %arg6[%c12_13, %c0_14], %16 {strides = array<i32>} : memref<108x512xf32, #tpu.memory_space<vmem>>, vector<4x512xf32>,
    %c64_i32 = arith.constant 64 : i32
    %18 = tpu.dynamic_rotate %1 by %c64_i32 dim 1 : vector<4x512xf32>, i32 -> vector<4x512xf32>
    %c16 = arith.constant 16 : index
    %c0_15 = arith.constant 0 : index
    %19 = vector.load %arg4[%c16, %c0_15] : memref<108x512xf32, #tpu.memory_space<vmem>>, vector<4x512xf32>
    %20 = arith.mulf %18, %19 : vector<4x512xf32>
    %c16_16 = arith.constant 16 : index
    %c0_17 = arith.constant 0 : index
    %21 = vector.load %arg6[%c16_16, %c0_17] : memref<108x512xf32, #tpu.memory_space<vmem>>, vector<4x512xf32>
    tpu.vector_store %arg6[%c16_16, %c0_17], %20 {strides = array<i32>} : memref<108x512xf32, #tpu.memory_space<vmem>>, vector<4x512xf32>,
    %c63_i32 = arith.constant 63 : i32
    %22 = tpu.dynamic_rotate %1 by %c63_i32 dim 1 : vector<4x512xf32>, i32 -> vector<4x512xf32>
    %c20 = arith.constant 20 : index
    %c0_18 = arith.constant 0 : index
    %23 = vector.load %arg4[%c20, %c0_18] : memref<108x512xf32, #tpu.memory_space<vmem>>, vector<4x512xf32>
    %24 = arith.mulf %22, %23 : vector<4x512xf32>
    %c20_19 = arith.constant 20 : index
    %c0_20 = arith.constant 0 : index
    %25 = vector.load %arg6[%c20_19, %c0_20] : memref<108x512xf32, #tpu.memory_space<vmem>>, vector<4x512xf32>
    tpu.vector_store %arg6[%c20_19, %c0_20], %24 {strides = array<i32>} : memref<108x512xf32, #tpu.memory_space<vmem>>, vector<4x512xf32>,
    %c57_i32 = arith.constant 57 : i32
    %26 = tpu.dynamic_rotate %1 by %c57_i32 dim 1 : vector<4x512xf32>, i32 -> vector<4x512xf32>
    %c24 = arith.constant 24 : index
    %c0_21 = arith.constant 0 : index
    %27 = vector.load %arg4[%c24, %c0_21] : memref<108x512xf32, #tpu.memory_space<vmem>>, vector<4x512xf32>
    %28 = arith.mulf %26, %27 : vector<4x512xf32>
    %c24_22 = arith.constant 24 : index
    %c0_23 = arith.constant 0 : index
    %29 = vector.load %arg6[%c24_22, %c0_23] : memref<108x512xf32, #tpu.memory_space<vmem>>, vector<4x512xf32>
    tpu.vector_store %arg6[%c24_22, %c0_23], %28 {strides = array<i32>} : memref<108x512xf32, #tpu.memory_space<vmem>>, vector<4x512xf32>,
    %c56_i32 = arith.constant 56 : i32
    %30 = tpu.dynamic_rotate %1 by %c56_i32 dim 1 : vector<4x512xf32>, i32 -> vector<4x512xf32>
    %c28 = arith.constant 28 : index
    %c0_24 = arith.constant 0 : index
    %31 = vector.load %arg4[%c28, %c0_24] : memref<108x512xf32, #tpu.memory_space<vmem>>, vector<4x512xf32>
    %32 = arith.mulf %30, %31 : vector<4x512xf32>
    %c28_25 = arith.constant 28 : index
    %c0_26 = arith.constant 0 : index
    %33 = vector.load %arg6[%c28_25, %c0_26] : memref<108x512xf32, #tpu.memory_space<vmem>>, vector<4x512xf32>
    tpu.vector_store %arg6[%c28_25, %c0_26], %32 {strides = array<i32>} : memref<108x512xf32, #tpu.memory_space<vmem>>, vector<4x512xf32>,
    %c55_i32 = arith.constant 55 : i32
    %34 = tpu.dynamic_rotate %1 by %c55_i32 dim 1 : vector<4x512xf32>, i32 -> vector<4x512xf32>
    %c32 = arith.constant 32 : index
    %c0_27 = arith.constant 0 : index
    %35 = vector.load %arg4[%c32, %c0_27] : memref<108x512xf32, #tpu.memory_space<vmem>>, vector<4x512xf32>
    %36 = arith.mulf %34, %35 : vector<4x512xf32>
    %c32_28 = arith.constant 32 : index
    %c0_29 = arith.constant 0 : index
    %37 = vector.load %arg6[%c32_28, %c0_29] : memref<108x512xf32, #tpu.memory_space<vmem>>, vector<4x512xf32>
    tpu.vector_store %arg6[%c32_28, %c0_29], %36 {strides = array<i32>} : memref<108x512xf32, #tpu.memory_space<vmem>>, vector<4x512xf32>,
    %c9_i32 = arith.constant 9 : i32
    %38 = tpu.dynamic_rotate %1 by %c9_i32 dim 1 : vector<4x512xf32>, i32 -> vector<4x512xf32>
    %c36 = arith.constant 36 : index
    %c0_30 = arith.constant 0 : index
    %39 = vector.load %arg4[%c36, %c0_30] : memref<108x512xf32, #tpu.memory_space<vmem>>, vector<4x512xf32>
    %40 = arith.mulf %38, %39 : vector<4x512xf32>
    %c36_31 = arith.constant 36 : index
    %c0_32 = arith.constant 0 : index
    %41 = vector.load %arg6[%c36_31, %c0_32] : memref<108x512xf32, #tpu.memory_space<vmem>>, vector<4x512xf32>
    tpu.vector_store %arg6[%c36_31, %c0_32], %40 {strides = array<i32>} : memref<108x512xf32, #tpu.memory_space<vmem>>, vector<4x512xf32>,
    %c8_i32 = arith.constant 8 : i32
    %42 = tpu.dynamic_rotate %1 by %c8_i32 dim 1 : vector<4x512xf32>, i32 -> vector<4x512xf32>
    %c40 = arith.constant 40 : index
    %c0_33 = arith.constant 0 : index
    %43 = vector.load %arg4[%c40, %c0_33] : memref<108x512xf32, #tpu.memory_space<vmem>>, vector<4x512xf32>
    %44 = arith.mulf %42, %43 : vector<4x512xf32>
    %c40_34 = arith.constant 40 : index
    %c0_35 = arith.constant 0 : index
    %45 = vector.load %arg6[%c40_34, %c0_35] : memref<108x512xf32, #tpu.memory_space<vmem>>, vector<4x512xf32>
    tpu.vector_store %arg6[%c40_34, %c0_35], %44 {strides = array<i32>} : memref<108x512xf32, #tpu.memory_space<vmem>>, vector<4x512xf32>,
    %c7_i32 = arith.constant 7 : i32
    %46 = tpu.dynamic_rotate %1 by %c7_i32 dim 1 : vector<4x512xf32>, i32 -> vector<4x512xf32>
    %c44 = arith.constant 44 : index
    %c0_36 = arith.constant 0 : index
    %47 = vector.load %arg4[%c44, %c0_36] : memref<108x512xf32, #tpu.memory_space<vmem>>, vector<4x512xf32>
    %48 = arith.mulf %46, %47 : vector<4x512xf32>
    %c44_37 = arith.constant 44 : index
    %c0_38 = arith.constant 0 : index
    %49 = vector.load %arg6[%c44_37, %c0_38] : memref<108x512xf32, #tpu.memory_space<vmem>>, vector<4x512xf32>
    tpu.vector_store %arg6[%c44_37, %c0_38], %48 {strides = array<i32>} : memref<108x512xf32, #tpu.memory_space<vmem>>, vector<4x512xf32>,
    %c1_i32 = arith.constant 1 : i32
    %50 = tpu.dynamic_rotate %1 by %c1_i32 dim 1 : vector<4x512xf32>, i32 -> vector<4x512xf32>
    %c48 = arith.constant 48 : index
    %c0_39 = arith.constant 0 : index
    %51 = vector.load %arg4[%c48, %c0_39] : memref<108x512xf32, #tpu.memory_space<vmem>>, vector<4x512xf32>
    %52 = arith.mulf %50, %51 : vector<4x512xf32>
    %c48_40 = arith.constant 48 : index
    %c0_41 = arith.constant 0 : index
    %53 = vector.load %arg6[%c48_40, %c0_41] : memref<108x512xf32, #tpu.memory_space<vmem>>, vector<4x512xf32>
    tpu.vector_store %arg6[%c48_40, %c0_41], %52 {strides = array<i32>} : memref<108x512xf32, #tpu.memory_space<vmem>>, vector<4x512xf32>,
    %c52 = arith.constant 52 : index
    %c0_42 = arith.constant 0 : index
    %54 = vector.load %arg4[%c52, %c0_42] : memref<108x512xf32, #tpu.memory_space<vmem>>, vector<4x512xf32>
    %55 = arith.mulf %1, %54 : vector<4x512xf32>
    %c52_43 = arith.constant 52 : index
    %c0_44 = arith.constant 0 : index
    %56 = vector.load %arg6[%c52_43, %c0_44] : memref<108x512xf32, #tpu.memory_space<vmem>>, vector<4x512xf32>
    tpu.vector_store %arg6[%c52_43, %c0_44], %55 {strides = array<i32>} : memref<108x512xf32, #tpu.memory_space<vmem>>, vector<4x512xf32>,
    %c511_i32 = arith.constant 511 : i32
    %57 = tpu.dynamic_rotate %1 by %c511_i32 dim 1 : vector<4x512xf32>, i32 -> vector<4x512xf32>
    %c56 = arith.constant 56 : index
    %c0_45 = arith.constant 0 : index
    %58 = vector.load %arg4[%c56, %c0_45] : memref<108x512xf32, #tpu.memory_space<vmem>>, vector<4x512xf32>
    %59 = arith.mulf %57, %58 : vector<4x512xf32>
    %c56_46 = arith.constant 56 : index
    %c0_47 = arith.constant 0 : index
    %60 = vector.load %arg6[%c56_46, %c0_47] : memref<108x512xf32, #tpu.memory_space<vmem>>, vector<4x512xf32>
    tpu.vector_store %arg6[%c56_46, %c0_47], %59 {strides = array<i32>} : memref<108x512xf32, #tpu.memory_space<vmem>>, vector<4x512xf32>,
    %c505_i32 = arith.constant 505 : i32
    %61 = tpu.dynamic_rotate %1 by %c505_i32 dim 1 : vector<4x512xf32>, i32 -> vector<4x512xf32>
    %c60 = arith.constant 60 : index
    %c0_48 = arith.constant 0 : index
    %62 = vector.load %arg4[%c60, %c0_48] : memref<108x512xf32, #tpu.memory_space<vmem>>, vector<4x512xf32>
    %63 = arith.mulf %61, %62 : vector<4x512xf32>
    %c60_49 = arith.constant 60 : index
    %c0_50 = arith.constant 0 : index
    %64 = vector.load %arg6[%c60_49, %c0_50] : memref<108x512xf32, #tpu.memory_space<vmem>>, vector<4x512xf32>
    tpu.vector_store %arg6[%c60_49, %c0_50], %63 {strides = array<i32>} : memref<108x512xf32, #tpu.memory_space<vmem>>, vector<4x512xf32>,
    %c504_i32 = arith.constant 504 : i32
    %65 = tpu.dynamic_rotate %1 by %c504_i32 dim 1 : vector<4x512xf32>, i32 -> vector<4x512xf32>
    %c64 = arith.constant 64 : index
    %c0_51 = arith.constant 0 : index
    %66 = vector.load %arg4[%c64, %c0_51] : memref<108x512xf32, #tpu.memory_space<vmem>>, vector<4x512xf32>
    %67 = arith.mulf %65, %66 : vector<4x512xf32>
    %c64_52 = arith.constant 64 : index
    %c0_53 = arith.constant 0 : index
    %68 = vector.load %arg6[%c64_52, %c0_53] : memref<108x512xf32, #tpu.memory_space<vmem>>, vector<4x512xf32>
    tpu.vector_store %arg6[%c64_52, %c0_53], %67 {strides = array<i32>} : memref<108x512xf32, #tpu.memory_space<vmem>>, vector<4x512xf32>,
    %c503_i32 = arith.constant 503 : i32
    %69 = tpu.dynamic_rotate %1 by %c503_i32 dim 1 : vector<4x512xf32>, i32 -> vector<4x512xf32>
    %c68 = arith.constant 68 : index
    %c0_54 = arith.constant 0 : index
    %70 = vector.load %arg4[%c68, %c0_54] : memref<108x512xf32, #tpu.memory_space<vmem>>, vector<4x512xf32>
    %71 = arith.mulf %69, %70 : vector<4x512xf32>
    %c68_55 = arith.constant 68 : index
    %c0_56 = arith.constant 0 : index
    %72 = vector.load %arg6[%c68_55, %c0_56] : memref<108x512xf32, #tpu.memory_space<vmem>>, vector<4x512xf32>
    tpu.vector_store %arg6[%c68_55, %c0_56], %71 {strides = array<i32>} : memref<108x512xf32, #tpu.memory_space<vmem>>, vector<4x512xf32>,
    %c457_i32 = arith.constant 457 : i32
    %73 = tpu.dynamic_rotate %1 by %c457_i32 dim 1 : vector<4x512xf32>, i32 -> vector<4x512xf32>
    %c72 = arith.constant 72 : index
    %c0_57 = arith.constant 0 : index
    %74 = vector.load %arg4[%c72, %c0_57] : memref<108x512xf32, #tpu.memory_space<vmem>>, vector<4x512xf32>
    %75 = arith.mulf %73, %74 : vector<4x512xf32>
    %c72_58 = arith.constant 72 : index
    %c0_59 = arith.constant 0 : index
    %76 = vector.load %arg6[%c72_58, %c0_59] : memref<108x512xf32, #tpu.memory_space<vmem>>, vector<4x512xf32>
    tpu.vector_store %arg6[%c72_58, %c0_59], %75 {strides = array<i32>} : memref<108x512xf32, #tpu.memory_space<vmem>>, vector<4x512xf32>,
    %c456_i32 = arith.constant 456 : i32
    %77 = tpu.dynamic_rotate %1 by %c456_i32 dim 1 : vector<4x512xf32>, i32 -> vector<4x512xf32>
    %c76 = arith.constant 76 : index
    %c0_60 = arith.constant 0 : index
    %78 = vector.load %arg4[%c76, %c0_60] : memref<108x512xf32, #tpu.memory_space<vmem>>, vector<4x512xf32>
    %79 = arith.mulf %77, %78 : vector<4x512xf32>
    %c76_61 = arith.constant 76 : index
    %c0_62 = arith.constant 0 : index
    %80 = vector.load %arg6[%c76_61, %c0_62] : memref<108x512xf32, #tpu.memory_space<vmem>>, vector<4x512xf32>
    tpu.vector_store %arg6[%c76_61, %c0_62], %79 {strides = array<i32>} : memref<108x512xf32, #tpu.memory_space<vmem>>, vector<4x512xf32>,
    %c455_i32 = arith.constant 455 : i32
    %81 = tpu.dynamic_rotate %1 by %c455_i32 dim 1 : vector<4x512xf32>, i32 -> vector<4x512xf32>
    %c80 = arith.constant 80 : index
    %c0_63 = arith.constant 0 : index
    %82 = vector.load %arg4[%c80, %c0_63] : memref<108x512xf32, #tpu.memory_space<vmem>>, vector<4x512xf32>
    %83 = arith.mulf %81, %82 : vector<4x512xf32>
    %c80_64 = arith.constant 80 : index
    %c0_65 = arith.constant 0 : index
    %84 = vector.load %arg6[%c80_64, %c0_65] : memref<108x512xf32, #tpu.memory_space<vmem>>, vector<4x512xf32>
    tpu.vector_store %arg6[%c80_64, %c0_65], %83 {strides = array<i32>} : memref<108x512xf32, #tpu.memory_space<vmem>>, vector<4x512xf32>,
    %c449_i32 = arith.constant 449 : i32
    %85 = tpu.dynamic_rotate %1 by %c449_i32 dim 1 : vector<4x512xf32>, i32 -> vector<4x512xf32>
    %c84 = arith.constant 84 : index
    %c0_66 = arith.constant 0 : index
    %86 = vector.load %arg4[%c84, %c0_66] : memref<108x512xf32, #tpu.memory_space<vmem>>, vector<4x512xf32>
    %87 = arith.mulf %85, %86 : vector<4x512xf32>
    %c84_67 = arith.constant 84 : index
    %c0_68 = arith.constant 0 : index
    %88 = vector.load %arg6[%c84_67, %c0_68] : memref<108x512xf32, #tpu.memory_space<vmem>>, vector<4x512xf32>
    tpu.vector_store %arg6[%c84_67, %c0_68], %87 {strides = array<i32>} : memref<108x512xf32, #tpu.memory_space<vmem>>, vector<4x512xf32>,
    %c448_i32 = arith.constant 448 : i32
    %89 = tpu.dynamic_rotate %1 by %c448_i32 dim 1 : vector<4x512xf32>, i32 -> vector<4x512xf32>
    %c88 = arith.constant 88 : index
    %c0_69 = arith.constant 0 : index
    %90 = vector.load %arg4[%c88, %c0_69] : memref<108x512xf32, #tpu.memory_space<vmem>>, vector<4x512xf32>
    %91 = arith.mulf %89, %90 : vector<4x512xf32>
    %c88_70 = arith.constant 88 : index
    %c0_71 = arith.constant 0 : index
    %92 = vector.load %arg6[%c88_70, %c0_71] : memref<108x512xf32, #tpu.memory_space<vmem>>, vector<4x512xf32>
    tpu.vector_store %arg6[%c88_70, %c0_71], %91 {strides = array<i32>} : memref<108x512xf32, #tpu.memory_space<vmem>>, vector<4x512xf32>,
    %c447_i32 = arith.constant 447 : i32
    %93 = tpu.dynamic_rotate %1 by %c447_i32 dim 1 : vector<4x512xf32>, i32 -> vector<4x512xf32>
    %c92 = arith.constant 92 : index
    %c0_72 = arith.constant 0 : index
    %94 = vector.load %arg4[%c92, %c0_72] : memref<108x512xf32, #tpu.memory_space<vmem>>, vector<4x512xf32>
    %95 = arith.mulf %93, %94 : vector<4x512xf32>
    %c92_73 = arith.constant 92 : index
    %c0_74 = arith.constant 0 : index
    %96 = vector.load %arg6[%c92_73, %c0_74] : memref<108x512xf32, #tpu.memory_space<vmem>>, vector<4x512xf32>
    tpu.vector_store %arg6[%c92_73, %c0_74], %95 {strides = array<i32>} : memref<108x512xf32, #tpu.memory_space<vmem>>, vector<4x512xf32>,
    %c441_i32 = arith.constant 441 : i32
    %97 = tpu.dynamic_rotate %1 by %c441_i32 dim 1 : vector<4x512xf32>, i32 -> vector<4x512xf32>
    %c96 = arith.constant 96 : index
    %c0_75 = arith.constant 0 : index
    %98 = vector.load %arg4[%c96, %c0_75] : memref<108x512xf32, #tpu.memory_space<vmem>>, vector<4x512xf32>
    %99 = arith.mulf %97, %98 : vector<4x512xf32>
    %c96_76 = arith.constant 96 : index
    %c0_77 = arith.constant 0 : index
    %100 = vector.load %arg6[%c96_76, %c0_77] : memref<108x512xf32, #tpu.memory_space<vmem>>, vector<4x512xf32>
    tpu.vector_store %arg6[%c96_76, %c0_77], %99 {strides = array<i32>} : memref<108x512xf32, #tpu.memory_space<vmem>>, vector<4x512xf32>,
    %c440_i32 = arith.constant 440 : i32
    %101 = tpu.dynamic_rotate %1 by %c440_i32 dim 1 : vector<4x512xf32>, i32 -> vector<4x512xf32>
    %c100 = arith.constant 100 : index
    %c0_78 = arith.constant 0 : index
    %102 = vector.load %arg4[%c100, %c0_78] : memref<108x512xf32, #tpu.memory_space<vmem>>, vector<4x512xf32>
    %103 = arith.mulf %101, %102 : vector<4x512xf32>
    %c100_79 = arith.constant 100 : index
    %c0_80 = arith.constant 0 : index
    %104 = vector.load %arg6[%c100_79, %c0_80] : memref<108x512xf32, #tpu.memory_space<vmem>>, vector<4x512xf32>
    tpu.vector_store %arg6[%c100_79, %c0_80], %103 {strides = array<i32>} : memref<108x512xf32, #tpu.memory_space<vmem>>, vector<4x512xf32>,
    %c439_i32 = arith.constant 439 : i32
    %105 = tpu.dynamic_rotate %1 by %c439_i32 dim 1 : vector<4x512xf32>, i32 -> vector<4x512xf32>
    %c104 = arith.constant 104 : index
    %c0_81 = arith.constant 0 : index
    %106 = vector.load %arg4[%c104, %c0_81] : memref<108x512xf32, #tpu.memory_space<vmem>>, vector<4x512xf32>
    %107 = arith.mulf %105, %106 : vector<4x512xf32>
    %c104_82 = arith.constant 104 : index
    %c0_83 = arith.constant 0 : index
    %108 = vector.load %arg6[%c104_82, %c0_83] : memref<108x512xf32, #tpu.memory_space<vmem>>, vector<4x512xf32>
    tpu.vector_store %arg6[%c104_82, %c0_83], %107 {strides = array<i32>} : memref<108x512xf32, #tpu.memory_space<vmem>>, vector<4x512xf32>,
    %c0_84 = arith.constant 0 : index
    %c0_85 = arith.constant 0 : index
    %109 = vector.load %arg2[%c0_84, %c0_85] : memref<8x108xf32, #tpu.memory_space<vmem>>, vector<8x108xf32>
    %c0_86 = arith.constant 0 : index
    %c0_87 = arith.constant 0 : index
    %110 = vector.load %arg6[%c0_86, %c0_87] : memref<108x512xf32, #tpu.memory_space<vmem>>, vector<108x512xf32>
    %cst = arith.constant dense<0.000000e+00> : vector<8x512xf32>
    %111 = tpu.matmul %109, %110, %cst {dimension_numbers = #tpu.dot_dimension_numbers<[1], [0], [0], [1], [0, 0, 1, 1], [], []>} : vector<8x108xf32>, vector<108x512xf32>, vector<8x512xf32> -> vector<8x512xf32>
    %c0_88 = arith.constant 0 : index
    %c0_89 = arith.constant 0 : index
    %112 = vector.load %arg3[%c0_88, %c0_89] : memref<8x1xf32, #tpu.memory_space<vmem>>, vector<8x1xf32>
    %113 = vector.broadcast %112 : vector<8x1xf32> to vector<8x512xf32>
    %114 = arith.addf %111, %113 : vector<8x512xf32>
    %cst_90 = arith.constant 0.000000e+00 : f32
    %115 = vector.broadcast %cst_90 : f32 to vector<8x512xf32>
    %116 = arith.maximumf %114, %115 : vector<8x512xf32>
    %c0_91 = arith.constant 0 : index
    %c0_92 = arith.constant 0 : index
    %c0_93 = arith.constant 0 : index
    %117 = vector.load %arg5[%c0_91, %c0_92, %c0_93] : memref<1x12x512xf32, #tpu.memory_space<vmem>>, vector<1x4x512xf32>
    %118 = vector.shape_cast %117 : vector<1x4x512xf32> to vector<4x512xf32>
    %119 = vector.shape_cast %1 : vector<4x512xf32> to vector<1x4x512xf32>
    tpu.vector_store %arg5[%c0_91, %c0_92, %c0_93], %119 {strides = array<i32>} : memref<1x12x512xf32, #tpu.memory_space<vmem>>, vector<1x4x512xf32>,
    %c0_94 = arith.constant 0 : index
    %c4_95 = arith.constant 4 : index
    %c0_96 = arith.constant 0 : index
    %120 = vector.load %arg5[%c0_94, %c4_95, %c0_96] : memref<1x12x512xf32, #tpu.memory_space<vmem>>, vector<1x8x512xf32>
    %121 = vector.shape_cast %120 : vector<1x8x512xf32> to vector<8x512xf32>
    %122 = vector.shape_cast %116 : vector<8x512xf32> to vector<1x8x512xf32>
    tpu.vector_store %arg5[%c0_94, %c4_95, %c0_96], %122 {strides = array<i32>} : memref<1x12x512xf32, #tpu.memory_space<vmem>>, vector<1x8x512xf32>,
    return
  }
  func.func @transform_0(%arg0: i32) -> (i32, i32, i32) {
    %c0_i32 = arith.constant 0 : i32
    %c0_i32_0 = arith.constant 0 : i32
    %c0_i32_1 = arith.constant 0 : i32
    return %arg0, %c0_i32, %c0_i32_0 : i32, i32, i32
  }
  func.func @transform_1(%arg0: i32) -> (i32, i32) {
    %c0_i32 = arith.constant 0 : i32
    %c0_i32_0 = arith.constant 0 : i32
    %c0_i32_1 = arith.constant 0 : i32
    return %c0_i32, %c0_i32_0 : i32, i32
  }
  func.func @transform_2(%arg0: i32) -> (i32, i32) {
    %c0_i32 = arith.constant 0 : i32
    %c0_i32_0 = arith.constant 0 : i32
    %c0_i32_1 = arith.constant 0 : i32
    return %c0_i32, %c0_i32_0 : i32, i32
  }
  func.func @transform_3(%arg0: i32) -> (i32, i32) {
    %c0_i32 = arith.constant 0 : i32
    %c0_i32_0 = arith.constant 0 : i32
    %c0_i32_1 = arith.constant 0 : i32
    return %c0_i32, %c0_i32_0 : i32, i32
  }
  func.func @transform_4(%arg0: i32) -> (i32, i32, i32) {
    %c0_i32 = arith.constant 0 : i32
    %c0_i32_0 = arith.constant 0 : i32
    %c0_i32_1 = arith.constant 0 : i32
    return %arg0, %c0_i32, %c0_i32_0 : i32, i32, i32
  }
}

</mosaic_0001>

<llo_original>
// kernel: tpu_custom_call.1
$region0: #{tpu_custom_call.1}
  #allocation0 [shape = 'u32[]', space=smem, size = 0x4, offset = 0x4, fixed_abs, tag = 'smem constant byte address 0x4 - core index']
  #allocation1 [shape = 'u32[72,128]{1,0:T(1,128)}', space=vmem, size = 0x9000, scoped, tag = 'internal scratch']
  #allocation2 [shape = 'f32[108,512]{1,0:T(8,128)}', space=vmem, size = 0x38000, scoped, tag = 'scratch operand']
  %s0 = inlined_call_operand.hbm [shape: f32[2,4,512], index: 0, kind: input, shape index: {}]
  %s1 = inlined_call_operand.vmem [shape: f32[8,108], index: 1, kind: input, shape index: {}]
  %s2 = inlined_call_operand.vmem [shape: f32[8,1], index: 2, kind: input, shape index: {}]
  %s3 = inlined_call_operand.hbm [shape: f32[108,512], index: 3, kind: input, shape index: {}]
  %s4 = inlined_call_operand.vmem [shape: f32[2,12,512], index: 4, kind: output, shape index: {}]
  %s5 = sld [smem:[#allocation0]]
  $region57: #{tpu_custom_call.1} parent=0
    _
  %s7 = ssub.s32 1, %s5
  %s8 = scalar_select 0, %s7, %s5
  $region1: #{tpu_custom_call.1} parent=0
    #allocation3 [shape = 'u8[16384]{0}', space=vmem, size = 0x4000, scoped, tag = 'input window, operand 0']
    #allocation4 [shape = 's32[2]{0}', space=sflag, size = 0x8, scoped, tag = 'scoped memory for tpu_custom_call.1']
    #allocation5 [shape = 'u8[229376]{0}', space=vmem, size = 0x38000, scoped, tag = 'input window, operand 3, single buffered']
    #allocation6 [shape = 's32[1]{0}', space=sflag, size = 0x4, scoped, tag = 'scoped memory for tpu_custom_call.1']
    %9 = vsyncpa [#allocation4], 0
    %s10 = scalar_lea.sflag [#allocation4], 1
    %11 = vsyncpa %s10, 0
    %12 = vsyncpa [#allocation6], 0
    loop: start=0, step=1, limit=4
    $region2: #{tpu_custom_call.1} parent=1 // loop_pre_header
      _
    $region3: #{tpu_custom_call.1} parent=1 // loop_header
      %s14 = sphi 0, %s18
      %p15 = scmp.ge.s32.totalorder %s14, 4
      %s24 = sphi 0, %s26
      %s27 = sphi 0, %s24
      %s28 = sphi 0, %s27
      %s44 = sphi 0, %s28
      %s48 = sphi 0, %s48
      %s50 = sphi 0, %s48
      %s51 = sphi 0, %s50
      %s65 = sphi 0, %s51
      %s69 = sphi 0, %s69
      %s71 = sphi 0, %s69
      %s72 = sphi 0, %s71
      %s86 = sphi 0, %s72
      %s90 = sphi 0, %s90
      %s92 = sphi 0, %s90
      %s93 = sphi 0, %s92
      %s107 = sphi 0, %s93
      %s113 = sphi 0, %s115
      %s116 = sphi 0, %s113
      %s117 = sphi 0, %s116
      %s133 = sphi 0, %s117
    $region4: #{tpu_custom_call.1} parent=1 // loop_header_branch
      %17 = sbr.rel (%p15) target = $region8
    $region5: #{tpu_custom_call.1} parent=1 // loop_body
      %s19 = ssub.s32 %s14, 1
      %s20 = ssub.s32 %s14, 2
      %s21 = sadd.s32 %s14, 1
      %s22 = ssub.s32 %s14, %s21
      %p23 = scmp.eq.s32.totalorder %s22, 0
      %s25 = sadd.s32 %s24, 1
      %s26 = scalar_select %p23, %s24, %s25
      %p29 = pneg %p23
      %p30 = scmp.eq.s32.totalorder %s14, 1
      %p31 = por %p29, %p30
      %p32 = scmp.ne.s32.totalorder %s24, %s27
      %p33 = scmp.eq.s32.totalorder %s14, 0
      %p34 = por %p32, %p33
      %p35 = scmp.ne.s32.totalorder %s24, %s27
      %p36 = scmp.eq.s32.totalorder %s19, 1
      %p37 = por %p35, %p36
      %p38 = scmp.ne.s32.totalorder %s27, %s28
      %p39 = scmp.eq.s32.totalorder %s19, 0
      %p40 = por %p38, %p39
      %p41 = scmp.ne.s32.totalorder %s27, %s28
      %p42 = scmp.eq.s32.totalorder %s20, 1
      %p43 = por %p41, %p42
      %p45 = scmp.ne.s32.totalorder %s28, %s44
      %p46 = scmp.eq.s32.totalorder %s20, 0
      %p47 = por %p45, %p46
      %s49 = sadd.s32 %s48, 1
      %p52 = scmp.eq.s32.totalorder %s14, 1
      %p53 = scmp.ne.s32.totalorder %s48, %s50
      %p54 = scmp.eq.s32.totalorder %s14, 0
      %p55 = por %p53, %p54
      %p56 = scmp.ne.s32.totalorder %s48, %s50
      %p57 = scmp.eq.s32.totalorder %s19, 1
      %p58 = por %p56, %p57
      %p59 = scmp.ne.s32.totalorder %s50, %s51
      %p60 = scmp.eq.s32.totalorder %s19, 0
      %p61 = por %p59, %p60
      %p62 = scmp.ne.s32.totalorder %s50, %s51
      %p63 = scmp.eq.s32.totalorder %s20, 1
      %p64 = por %p62, %p63
      %p66 = scmp.ne.s32.totalorder %s51, %s65
      %p67 = scmp.eq.s32.totalorder %s20, 0
      %p68 = por %p66, %p67
      %s70 = sadd.s32 %s69, 1
      %p73 = scmp.eq.s32.totalorder %s14, 1
      %p74 = scmp.ne.s32.totalorder %s69, %s71
      %p75 = scmp.eq.s32.totalorder %s14, 0
      %p76 = por %p74, %p75
      %p77 = scmp.ne.s32.totalorder %s69, %s71
      %p78 = scmp.eq.s32.totalorder %s19, 1
      %p79 = por %p77, %p78
      %p80 = scmp.ne.s32.totalorder %s71, %s72
      %p81 = scmp.eq.s32.totalorder %s19, 0
      %p82 = por %p80, %p81
      %p83 = scmp.ne.s32.totalorder %s71, %s72
      %p84 = scmp.eq.s32.totalorder %s20, 1
      %p85 = por %p83, %p84
      %p87 = scmp.ne.s32.totalorder %s72, %s86
      %p88 = scmp.eq.s32.totalorder %s20, 0
      %p89 = por %p87, %p88
      %s91 = sadd.s32 %s90, 1
      %p94 = scmp.eq.s32.totalorder %s14, 1
      %p95 = scmp.ne.s32.totalorder %s90, %s92
      %p96 = scmp.eq.s32.totalorder %s14, 0
      %p97 = por %p95, %p96
      %p98 = scmp.ne.s32.totalorder %s90, %s92
      %p99 = scmp.eq.s32.totalorder %s19, 1
      %p100 = por %p98, %p99
      %p101 = scmp.ne.s32.totalorder %s92, %s93
      %p102 = scmp.eq.s32.totalorder %s19, 0
      %p103 = por %p101, %p102
      %p104 = scmp.ne.s32.totalorder %s92, %s93
      %p105 = scmp.eq.s32.totalorder %s20, 1
      %p106 = por %p104, %p105
      %p108 = scmp.ne.s32.totalorder %s93, %s107
      %p109 = scmp.eq.s32.totalorder %s20, 0
      %p110 = por %p108, %p109
      %s111 = ssub.s32 %s14, %s21
      %p112 = scmp.eq.s32.totalorder %s111, 0
      %s114 = sadd.s32 %s113, 1
      %s115 = scalar_select %p112, %s113, %s114
      %p118 = pneg %p112
      %p119 = scmp.eq.s32.totalorder %s14, 1
      %p120 = por %p118, %p119
      %p121 = scmp.ne.s32.totalorder %s113, %s116
      %p122 = scmp.eq.s32.totalorder %s14, 0
      %p123 = por %p121, %p122
      %p124 = scmp.ne.s32.totalorder %s113, %s116
      %p125 = scmp.eq.s32.totalorder %s19, 1
      %p126 = por %p124, %p125
      %p127 = scmp.ne.s32.totalorder %s116, %s117
      %p128 = scmp.eq.s32.totalorder %s19, 0
      %p129 = por %p127, %p128
      %p130 = scmp.ne.s32.totalorder %s116, %s117
      %p131 = scmp.eq.s32.totalorder %s20, 1
      %p132 = por %p130, %p131
      %p134 = scmp.ne.s32.totalorder %s117, %s133
      %p135 = scmp.eq.s32.totalorder %s20, 0
      %p136 = por %p134, %p135
      %p137 = scmp.le.s32.totalorder 1, %s14
      %p138 = scmp.lt.s32.totalorder %s14, 3
      %p139 = pnand %p137, %p138
      %p140 = pneg %p139
      // Predicated region
      $region9: #{tpu_custom_call.1} parent=5 // pred_check
        _
      $region10: #{tpu_custom_call.1} parent=5 // pred_check_branch
        %142 = sbr.rel (%p139) target = $region12
      $region11: #{tpu_custom_call.1} parent=5 // pred_region
        %s143 = ssub.s32 %s14, 1
        // Predicated region
        $region13: #{tpu_custom_call.1} parent=11 // pred_check
          %p144 = pneg %p61
        $region14: #{tpu_custom_call.1} parent=11 // pred_check_branch
          %146 = sbr.rel (%p144) target = $region16
        $region15: #{tpu_custom_call.1} parent=11 // pred_region
          _
        $region16: #{tpu_custom_call.1} parent=11 // pred_fallthru
          _
        // Predicated region
        $region17: #{tpu_custom_call.1} parent=11 // pred_check
          %p147 = pneg %p82
        $region18: #{tpu_custom_call.1} parent=11 // pred_check_branch
          %149 = sbr.rel (%p147) target = $region20
        $region19: #{tpu_custom_call.1} parent=11 // pred_region
          _
        $region20: #{tpu_custom_call.1} parent=11 // pred_fallthru
          _
        // Predicated region
        $region21: #{tpu_custom_call.1} parent=11 // pred_check
          %p150 = pneg %p103
        $region22: #{tpu_custom_call.1} parent=11 // pred_check_branch
          %152 = sbr.rel (%p150) target = $region24
        $region23: #{tpu_custom_call.1} parent=11 // pred_region
          %154 = vsyncadd [#allocation6], 0
          %s155 = sshll.u32 %s3, 4
          %s156 = int_to_ptr.hbm [resolvable:$true] %s155
          %s157 = sshll.u32 [#allocation5], 4
          %s158 = int_to_ptr.vmem [resolvable:$true] %s157
          %163 = dma.hbm_to_vmem [thread:$0]  %s156, 7168, %s158, [#allocation6], 512, 512, 32
        $region24: #{tpu_custom_call.1} parent=11 // pred_fallthru
          _
      $region12: #{tpu_custom_call.1} parent=5 // pred_fallthru
        _
      %p164 = scmp.lt.s32.totalorder %s14, 2
      // Predicated region
      $region25: #{tpu_custom_call.1} parent=5 // pred_check
        %p165 = pneg %p164
      $region26: #{tpu_custom_call.1} parent=5 // pred_check_branch
        %167 = sbr.rel (%p165) target = $region28
      $region27: #{tpu_custom_call.1} parent=5 // pred_region
        // Predicated region
        $region29: #{tpu_custom_call.1} parent=27 // pred_check
          %p168 = pneg %p34
        $region30: #{tpu_custom_call.1} parent=27 // pred_check_branch
          %170 = sbr.rel (%p168) target = $region32
        $region31: #{tpu_custom_call.1} parent=27 // pred_region
          %s171 = sand.u32 %s24, 1
          %s172 = scalar_lea.sflag [#allocation4], %s171
          %s173 = sand.u32 %s24, 1
          %s174 = smul.addr %s173, 16
          %s175 = scalar_lea.vmem [#allocation3], %s174
          %177 = vsyncadd %s172, 0
          %s178 = smul.addr %s14, 4
          %s179 = smul.addr %s178, 4
          %s180 = scalar_lea.hbm %s0, %s179
          %s182 = sshll.u32 %s180, 4
          %s183 = int_to_ptr.hbm [resolvable:$true] %s182
          %s184 = sshll.u32 %s175, 4
          %s185 = int_to_ptr.vmem [resolvable:$true] %s184
          %187 = dma.hbm_to_vmem [thread:$0]  %s183, 256, %s185, %s172
        $region32: #{tpu_custom_call.1} parent=27 // pred_fallthru
          _
      $region28: #{tpu_custom_call.1} parent=5 // pred_fallthru
        _
      %p188 = scmp.le.s32.totalorder 1, %s14
      %p189 = scmp.lt.s32.totalorder %s14, 3
      %p190 = pnand %p188, %p189
      %p191 = pneg %p190
      // Predicated region
      $region33: #{tpu_custom_call.1} parent=5 // pred_check
        _
      $region34: #{tpu_custom_call.1} parent=5 // pred_check_branch
        %193 = sbr.rel (%p190) target = $region36
      $region35: #{tpu_custom_call.1} parent=5 // pred_region
        %s194 = ssub.s32 %s14, 1
        %s195 = sand.u32 %s27, 1
        %s196 = scalar_lea.sflag [#allocation4], %s195
        %s197 = sand.u32 %s27, 1
        %s198 = smul.addr %s197, 16
        %s199 = scalar_lea.vmem [#allocation3], %s198
        // Predicated region
        $region37: #{tpu_custom_call.1} parent=35 // pred_check
          %p200 = pneg %p40
        $region38: #{tpu_custom_call.1} parent=35 // pred_check_branch
          %202 = sbr.rel (%p200) target = $region40
        $region39: #{tpu_custom_call.1} parent=35 // pred_region
          %204 = dma.done %s196, 256
        $region40: #{tpu_custom_call.1} parent=35 // pred_fallthru
          _
        // Predicated region
        $region41: #{tpu_custom_call.1} parent=35 // pred_check
          %p205 = pneg %p103
        $region42: #{tpu_custom_call.1} parent=35 // pred_check_branch
          %207 = sbr.rel (%p205) target = $region44
        $region43: #{tpu_custom_call.1} parent=35 // pred_region
          %209 = dma.done [#allocation6], 7168
        $region44: #{tpu_custom_call.1} parent=35 // pred_fallthru
          _
        %s210 = sand.u32 %s27, 1
        %s211 = scalar_lea.sflag [#allocation4], %s210
        %s212 = sand.u32 %s27, 1
        %s213 = smul.addr %s212, 16
        %s214 = scalar_lea.vmem [#allocation3], %s213
        %p215 = pneg %p40
        %p216 = pneg %p37
        %p217 = pneg %p61
        %p218 = pneg %p58
        %p219 = pneg %p82
        %p220 = pneg %p79
        %p221 = pneg %p103
        %p222 = pneg %p100
        %p223 = pneg %p129
        %p224 = pneg %p126
        %p225 = scmp.lt.s32.totalorder %s19, 1
        %s226 = scalar_select %p225, %s19, 1
        %s227 = smul.addr %s226, 8
        %s228 = smul.addr %s227, 8
        %s229 = scalar_lea.vmem %s4, %s228
        %p230 = scmp.lt.s32.totalorder %s19, 1
        %s231 = scalar_select %p230, %s19, 1
        %s232 = smul.addr %s231, 8
        %s233 = smul.addr %s232, 8
        %s234 = scalar_lea.vmem %s4, %s233
        %v235 = vld [vmem:[%s199] sm:$0xff]
        %v236 = vld [vmem:[%s199 + $0x8] sm:$0xff]
        %239 = vst [vmem:[#allocation1] ss:$2 sm:$0xff] %v235
        %s240 = scalar_lea.vmem [#allocation1], 16
        %241 = vst [vmem:[%s240] ss:$2 sm:$0xff] %v236
        %v242 = vld.sshfl [vmem:[#allocation1] sm:$0xff pattern:$0x75316420]
        %v243 = vld.sshfl [vmem:[#allocation1 + $0x8] sm:$0xff pattern:$0x75316420]
        %v244 = vld.sshfl [vmem:[#allocation1 + $0x10] sm:$0xff pattern:$0x75316420]
        %v245 = vld.sshfl [vmem:[#allocation1 + $0x18] sm:$0xff pattern:$0x75316420]
        %250 = vrot.lane.b32.xlu0 %v242, 73
        %v251 = vpop.permute.xlu0 %250
        %252 = vrot.lane.b32.xlu0 %v243, 73
        %v253 = vpop.permute.xlu0 %252
        %254 = vrot.lane.b32.xlu0 %v244, 73
        %v255 = vpop.permute.xlu0 %254
        %256 = vrot.lane.b32.xlu0 %v245, 73
        %v257 = vpop.permute.xlu0 %256
        %v258 = vlaneseq
        %v259 = vand.u32 %v258, 127
        %vm260 = vcmp.lt.s32.totalorder %v259, 73
        %v261 = vsel %vm260, %v255, %v257
        %v262 = vsel %vm260, %v253, %v255
        %v263 = vsel %vm260, %v251, %v253
        %v264 = vsel %vm260, %v257, %v251
        %v265 = vld [vmem:[#allocation5] sm:$0xf]
        %v266 = vld [vmem:[#allocation5 + $0x8] sm:$0xf]
        %v267 = vld [vmem:[#allocation5 + $0x10] sm:$0xf]
        %v268 = vld [vmem:[#allocation5 + $0x18] sm:$0xf]
        %v269 = vmul.f32 %v264, %v265
        %v270 = vmul.f32 %v263, %v266
        %v271 = vmul.f32 %v262, %v267
        %v272 = vmul.f32 %v261, %v268
        %273 = vst [vmem:[#allocation2] sm:$0xf] %v269
        %274 = vst [vmem:[#allocation2 + $0x8] sm:$0xf] %v270
        %275 = vst [vmem:[#allocation2 + $0x10] sm:$0xf] %v271
        %276 = vst [vmem:[#allocation2 + $0x18] sm:$0xf] %v272
        %277 = vst [vmem:[#allocation1] ss:$2 sm:$0xff] %v235
        %s278 = scalar_lea.vmem [#allocation1], 16
        %279 = vst [vmem:[%s278] ss:$2 sm:$0xff] %v236
        %v280 = vld.sshfl [vmem:[#allocation1] sm:$0xff pattern:$0x75316420]
        %v281 = vld.sshfl [vmem:[#allocation1 + $0x8] sm:$0xff pattern:$0x75316420]
        %v282 = vld.sshfl [vmem:[#allocation1 + $0x10] sm:$0xff pattern:$0x75316420]
        %v283 = vld.sshfl [vmem:[#allocation1 + $0x18] sm:$0xff pattern:$0x75316420]
        %288 = vrot.lane.b32.xlu0 %v280, 72
        %v289 = vpop.permute.xlu0 %288
        %290 = vrot.lane.b32.xlu0 %v281, 72
        %v291 = vpop.permute.xlu0 %290
        %292 = vrot.lane.b32.xlu0 %v282, 72
        %v293 = vpop.permute.xlu0 %292
        %294 = vrot.lane.b32.xlu0 %v283, 72
        %v295 = vpop.permute.xlu0 %294
        %vm296 = vcmp.lt.s32.totalorder %v259, 72
        %v297 = vsel %vm296, %v293, %v295
        %v298 = vsel %vm296, %v291, %v293
        %v299 = vsel %vm296, %v289, %v291
        %v300 = vsel %vm296, %v295, %v289
        %v301 = vld [vmem:[#allocation5] sm:$0xf0]
        %v302 = vld [vmem:[#allocation5 + $0x8] sm:$0xf0]
        %v303 = vld [vmem:[#allocation5 + $0x10] sm:$0xf0]
        %v304 = vld [vmem:[#allocation5 + $0x18] sm:$0xf0]
        %v309 = vrot.slane %v301, 4
        %v310 = vrot.slane %v302, 4
        %v311 = vrot.slane %v303, 4
        %v312 = vrot.slane %v304, 4
        %v317 = vmul.f32 %v300, %v309
        %v318 = vmul.f32 %v299, %v310
        %v319 = vmul.f32 %v298, %v311
        %v320 = vmul.f32 %v297, %v312
        %v325 = vrot.slane %v317, 4
        %v326 = vrot.slane %v318, 4
        %v327 = vrot.slane %v319, 4
        %v328 = vrot.slane %v320, 4
        %333 = vst [vmem:[#allocation2] sm:$0xf0] %v325
        %334 = vst [vmem:[#allocation2 + $0x8] sm:$0xf0] %v326
        %335 = vst [vmem:[#allocation2 + $0x10] sm:$0xf0] %v327
        %336 = vst [vmem:[#allocation2 + $0x18] sm:$0xf0] %v328
        %337 = vst [vmem:[#allocation1] ss:$2 sm:$0xff] %v235
        %s338 = scalar_lea.vmem [#allocation1], 16
        %339 = vst [vmem:[%s338] ss:$2 sm:$0xff] %v236
        %v340 = vld.sshfl [vmem:[#allocation1] sm:$0xff pattern:$0x75316420]
        %v341 = vld.sshfl [vmem:[#allocation1 + $0x8] sm:$0xff pattern:$0x75316420]
        %v342 = vld.sshfl [vmem:[#allocation1 + $0x10] sm:$0xff pattern:$0x75316420]
        %v343 = vld.sshfl [vmem:[#allocation1 + $0x18] sm:$0xff pattern:$0x75316420]
        %348 = vrot.lane.b32.xlu0 %v340, 71
        %v349 = vpop.permute.xlu0 %348
        %350 = vrot.lane.b32.xlu0 %v341, 71
        %v351 = vpop.permute.xlu0 %350
        %352 = vrot.lane.b32.xlu0 %v342, 71
        %v353 = vpop.permute.xlu0 %352
        %354 = vrot.lane.b32.xlu0 %v343, 71
        %v355 = vpop.permute.xlu0 %354
        %vm356 = vcmp.lt.s32.totalorder %v259, 71
        %v357 = vsel %vm356, %v353, %v355
        %v358 = vsel %vm356, %v351, %v353
        %v359 = vsel %vm356, %v349, %v351
        %v360 = vsel %vm356, %v355, %v349
        %v361 = vld [vmem:[#allocation5 + $0x20] sm:$0xf]
        %v362 = vld [vmem:[#allocation5 + $0x28] sm:$0xf]
        %v363 = vld [vmem:[#allocation5 + $0x30] sm:$0xf]
        %v364 = vld [vmem:[#allocation5 + $0x38] sm:$0xf]
        %v365 = vmul.f32 %v360, %v361
        %v366 = vmul.f32 %v359, %v362
        %v367 = vmul.f32 %v358, %v363
        %v368 = vmul.f32 %v357, %v364
        %369 = vst [vmem:[#allocation2 + $0x20] sm:$0xf] %v365
        %370 = vst [vmem:[#allocation2 + $0x28] sm:$0xf] %v366
        %371 = vst [vmem:[#allocation2 + $0x30] sm:$0xf] %v367
        %372 = vst [vmem:[#allocation2 + $0x38] sm:$0xf] %v368
        %373 = vst [vmem:[#allocation1] ss:$2 sm:$0xff] %v235
        %s374 = scalar_lea.vmem [#allocation1], 16
        %375 = vst [vmem:[%s374] ss:$2 sm:$0xff] %v236
        %v376 = vld.sshfl [vmem:[#allocation1] sm:$0xff pattern:$0x75316420]
        %v377 = vld.sshfl [vmem:[#allocation1 + $0x8] sm:$0xff pattern:$0x75316420]
        %v378 = vld.sshfl [vmem:[#allocation1 + $0x10] sm:$0xff pattern:$0x75316420]
        %v379 = vld.sshfl [vmem:[#allocation1 + $0x18] sm:$0xff pattern:$0x75316420]
        %384 = vrot.lane.b32.xlu0 %v376, 65
        %v385 = vpop.permute.xlu0 %384
        %386 = vrot.lane.b32.xlu0 %v377, 65
        %v387 = vpop.permute.xlu0 %386
        %388 = vrot.lane.b32.xlu0 %v378, 65
        %v389 = vpop.permute.xlu0 %388
        %390 = vrot.lane.b32.xlu0 %v379, 65
        %v391 = vpop.permute.xlu0 %390
        %vm392 = vcmp.lt.s32.totalorder %v259, 65
        %v393 = vsel %vm392, %v389, %v391
        %v394 = vsel %vm392, %v387, %v389
        %v395 = vsel %vm392, %v385, %v387
        %v396 = vsel %vm392, %v391, %v385
        %v397 = vld [vmem:[#allocation5 + $0x20] sm:$0xf0]
        %v398 = vld [vmem:[#allocation5 + $0x28] sm:$0xf0]
        %v399 = vld [vmem:[#allocation5 + $0x30] sm:$0xf0]
        %v400 = vld [vmem:[#allocation5 + $0x38] sm:$0xf0]
        %v405 = vrot.slane %v397, 4
        %v406 = vrot.slane %v398, 4
        %v407 = vrot.slane %v399, 4
        %v408 = vrot.slane %v400, 4
        %v413 = vmul.f32 %v396, %v405
        %v414 = vmul.f32 %v395, %v406
        %v415 = vmul.f32 %v394, %v407
        %v416 = vmul.f32 %v393, %v408
        %v421 = vrot.slane %v413, 4
        %v422 = vrot.slane %v414, 4
        %v423 = vrot.slane %v415, 4
        %v424 = vrot.slane %v416, 4
        %429 = vst [vmem:[#allocation2 + $0x20] sm:$0xf0] %v421
        %430 = vst [vmem:[#allocation2 + $0x28] sm:$0xf0] %v422
        %431 = vst [vmem:[#allocation2 + $0x30] sm:$0xf0] %v423
        %432 = vst [vmem:[#allocation2 + $0x38] sm:$0xf0] %v424
        %433 = vst [vmem:[#allocation1] ss:$2 sm:$0xff] %v235
        %s434 = scalar_lea.vmem [#allocation1], 16
        %435 = vst [vmem:[%s434] ss:$2 sm:$0xff] %v236
        %v436 = vld.sshfl [vmem:[#allocation1] sm:$0xff pattern:$0x75316420]
        %v437 = vld.sshfl [vmem:[#allocation1 + $0x8] sm:$0xff pattern:$0x75316420]
        %v438 = vld.sshfl [vmem:[#allocation1 + $0x10] sm:$0xff pattern:$0x75316420]
        %v439 = vld.sshfl [vmem:[#allocation1 + $0x18] sm:$0xff pattern:$0x75316420]
        %444 = vrot.lane.b32.xlu0 %v436, 64
        %v445 = vpop.permute.xlu0 %444
        %446 = vrot.lane.b32.xlu0 %v437, 64
        %v447 = vpop.permute.xlu0 %446
        %448 = vrot.lane.b32.xlu0 %v438, 64
        %v449 = vpop.permute.xlu0 %448
        %450 = vrot.lane.b32.xlu0 %v439, 64
        %v451 = vpop.permute.xlu0 %450
        %vm452 = vcmp.lt.s32.totalorder %v259, 64
        %v453 = vsel %vm452, %v449, %v451
        %v454 = vsel %vm452, %v447, %v449
        %v455 = vsel %vm452, %v445, %v447
        %v456 = vsel %vm452, %v451, %v445
        %v457 = vld [vmem:[#allocation5 + $0x40] sm:$0xf]
        %v458 = vld [vmem:[#allocation5 + $0x48] sm:$0xf]
        %v459 = vld [vmem:[#allocation5 + $0x50] sm:$0xf]
        %v460 = vld [vmem:[#allocation5 + $0x58] sm:$0xf]
        %v461 = vmul.f32 %v456, %v457
        %v462 = vmul.f32 %v455, %v458
        %v463 = vmul.f32 %v454, %v459
        %v464 = vmul.f32 %v453, %v460
        %465 = vst [vmem:[#allocation2 + $0x40] sm:$0xf] %v461
        %466 = vst [vmem:[#allocation2 + $0x48] sm:$0xf] %v462
        %467 = vst [vmem:[#allocation2 + $0x50] sm:$0xf] %v463
        %468 = vst [vmem:[#allocation2 + $0x58] sm:$0xf] %v464
        %469 = vst [vmem:[#allocation1] ss:$2 sm:$0xff] %v235
        %s470 = scalar_lea.vmem [#allocation1], 16
        %471 = vst [vmem:[%s470] ss:$2 sm:$0xff] %v236
        %v472 = vld.sshfl [vmem:[#allocation1] sm:$0xff pattern:$0x75316420]
        %v473 = vld.sshfl [vmem:[#allocation1 + $0x8] sm:$0xff pattern:$0x75316420]
        %v474 = vld.sshfl [vmem:[#allocation1 + $0x10] sm:$0xff pattern:$0x75316420]
        %v475 = vld.sshfl [vmem:[#allocation1 + $0x18] sm:$0xff pattern:$0x75316420]
        %480 = vrot.lane.b32.xlu0 %v472, 63
        %v481 = vpop.permute.xlu0 %480
        %482 = vrot.lane.b32.xlu0 %v473, 63
        %v483 = vpop.permute.xlu0 %482
        %484 = vrot.lane.b32.xlu0 %v474, 63
        %v485 = vpop.permute.xlu0 %484
        %486 = vrot.lane.b32.xlu0 %v475, 63
        %v487 = vpop.permute.xlu0 %486
        %vm488 = vcmp.lt.s32.totalorder %v259, 63
        %v489 = vsel %vm488, %v485, %v487
        %v490 = vsel %vm488, %v483, %v485
        %v491 = vsel %vm488, %v481, %v483
        %v492 = vsel %vm488, %v487, %v481
        %v493 = vld [vmem:[#allocation5 + $0x40] sm:$0xf0]
        %v494 = vld [vmem:[#allocation5 + $0x48] sm:$0xf0]
        %v495 = vld [vmem:[#allocation5 + $0x50] sm:$0xf0]
        %v496 = vld [vmem:[#allocation5 + $0x58] sm:$0xf0]
        %v501 = vrot.slane %v493, 4
        %v502 = vrot.slane %v494, 4
        %v503 = vrot.slane %v495, 4
        %v504 = vrot.slane %v496, 4
        %v509 = vmul.f32 %v492, %v501
        %v510 = vmul.f32 %v491, %v502
        %v511 = vmul.f32 %v490, %v503
        %v512 = vmul.f32 %v489, %v504
        %v517 = vrot.slane %v509, 4
        %v518 = vrot.slane %v510, 4
        %v519 = vrot.slane %v511, 4
        %v520 = vrot.slane %v512, 4
        %525 = vst [vmem:[#allocation2 + $0x40] sm:$0xf0] %v517
        %526 = vst [vmem:[#allocation2 + $0x48] sm:$0xf0] %v518
        %527 = vst [vmem:[#allocation2 + $0x50] sm:$0xf0] %v519
        %528 = vst [vmem:[#allocation2 + $0x58] sm:$0xf0] %v520
        %529 = vst [vmem:[#allocation1] ss:$2 sm:$0xff] %v235
        %s530 = scalar_lea.vmem [#allocation1], 16
        %531 = vst [vmem:[%s530] ss:$2 sm:$0xff] %v236
        %v532 = vld.sshfl [vmem:[#allocation1] sm:$0xff pattern:$0x75316420]
        %v533 = vld.sshfl [vmem:[#allocation1 + $0x8] sm:$0xff pattern:$0x75316420]
        %v534 = vld.sshfl [vmem:[#allocation1 + $0x10] sm:$0xff pattern:$0x75316420]
        %v535 = vld.sshfl [vmem:[#allocation1 + $0x18] sm:$0xff pattern:$0x75316420]
        %540 = vrot.lane.b32.xlu0 %v532, 57
        %v541 = vpop.permute.xlu0 %540
        %542 = vrot.lane.b32.xlu0 %v533, 57
        %v543 = vpop.permute.xlu0 %542
        %544 = vrot.lane.b32.xlu0 %v534, 57
        %v545 = vpop.permute.xlu0 %544
        %546 = vrot.lane.b32.xlu0 %v535, 57
        %v547 = vpop.permute.xlu0 %546
        %vm548 = vcmp.lt.s32.totalorder %v259, 57
        %v549 = vsel %vm548, %v545, %v547
        %v550 = vsel %vm548, %v543, %v545
        %v551 = vsel %vm548, %v541, %v543
        %v552 = vsel %vm548, %v547, %v541
        %v553 = vld [vmem:[#allocation5 + $0x60] sm:$0xf]
        %v554 = vld [vmem:[#allocation5 + $0x68] sm:$0xf]
        %v555 = vld [vmem:[#allocation5 + $0x70] sm:$0xf]
        %v556 = vld [vmem:[#allocation5 + $0x78] sm:$0xf]
        %v557 = vmul.f32 %v552, %v553
        %v558 = vmul.f32 %v551, %v554
        %v559 = vmul.f32 %v550, %v555
        %v560 = vmul.f32 %v549, %v556
        %561 = vst [vmem:[#allocation2 + $0x60] sm:$0xf] %v557
        %562 = vst [vmem:[#allocation2 + $0x68] sm:$0xf] %v558
        %563 = vst [vmem:[#allocation2 + $0x70] sm:$0xf] %v559
        %564 = vst [vmem:[#allocation2 + $0x78] sm:$0xf] %v560
        %565 = vst [vmem:[#allocation1] ss:$2 sm:$0xff] %v235
        %s566 = scalar_lea.vmem [#allocation1], 16
        %567 = vst [vmem:[%s566] ss:$2 sm:$0xff] %v236
        %v568 = vld.sshfl [vmem:[#allocation1] sm:$0xff pattern:$0x75316420]
        %v569 = vld.sshfl [vmem:[#allocation1 + $0x8] sm:$0xff pattern:$0x75316420]
        %v570 = vld.sshfl [vmem:[#allocation1 + $0x10] sm:$0xff pattern:$0x75316420]
        %v571 = vld.sshfl [vmem:[#allocation1 + $0x18] sm:$0xff pattern:$0x75316420]
        %576 = vrot.lane.b32.xlu0 %v568, 56
        %v577 = vpop.permute.xlu0 %576
        %578 = vrot.lane.b32.xlu0 %v569, 56
        %v579 = vpop.permute.xlu0 %578
        %580 = vrot.lane.b32.xlu0 %v570, 56
        %v581 = vpop.permute.xlu0 %580
        %582 = vrot.lane.b32.xlu0 %v571, 56
        %v583 = vpop.permute.xlu0 %582
        %vm584 = vcmp.lt.s32.totalorder %v259, 56
        %v585 = vsel %vm584, %v581, %v583
        %v586 = vsel %vm584, %v579, %v581
        %v587 = vsel %vm584, %v577, %v579
        %v588 = vsel %vm584, %v583, %v577
        %v589 = vld [vmem:[#allocation5 + $0x60] sm:$0xf0]
        %v590 = vld [vmem:[#allocation5 + $0x68] sm:$0xf0]
        %v591 = vld [vmem:[#allocation5 + $0x70] sm:$0xf0]
        %v592 = vld [vmem:[#allocation5 + $0x78] sm:$0xf0]
        %v597 = vrot.slane %v589, 4
        %v598 = vrot.slane %v590, 4
        %v599 = vrot.slane %v591, 4
        %v600 = vrot.slane %v592, 4
        %v605 = vmul.f32 %v588, %v597
        %v606 = vmul.f32 %v587, %v598
        %v607 = vmul.f32 %v586, %v599
        %v608 = vmul.f32 %v585, %v600
        %v613 = vrot.slane %v605, 4
        %v614 = vrot.slane %v606, 4
        %v615 = vrot.slane %v607, 4
        %v616 = vrot.slane %v608, 4
        %621 = vst [vmem:[#allocation2 + $0x60] sm:$0xf0] %v613
        %622 = vst [vmem:[#allocation2 + $0x68] sm:$0xf0] %v614
        %623 = vst [vmem:[#allocation2 + $0x70] sm:$0xf0] %v615
        %624 = vst [vmem:[#allocation2 + $0x78] sm:$0xf0] %v616
        %625 = vst [vmem:[#allocation1] ss:$2 sm:$0xff] %v235
        %s626 = scalar_lea.vmem [#allocation1], 16
        %627 = vst [vmem:[%s626] ss:$2 sm:$0xff] %v236
        %v628 = vld.sshfl [vmem:[#allocation1] sm:$0xff pattern:$0x75316420]
        %v629 = vld.sshfl [vmem:[#allocation1 + $0x8] sm:$0xff pattern:$0x75316420]
        %v630 = vld.sshfl [vmem:[#allocation1 + $0x10] sm:$0xff pattern:$0x75316420]
        %v631 = vld.sshfl [vmem:[#allocation1 + $0x18] sm:$0xff pattern:$0x75316420]
        %636 = vrot.lane.b32.xlu0 %v628, 55
        %v637 = vpop.permute.xlu0 %636
        %638 = vrot.lane.b32.xlu0 %v629, 55
        %v639 = vpop.permute.xlu0 %638
        %640 = vrot.lane.b32.xlu0 %v630, 55
        %v641 = vpop.permute.xlu0 %640
        %642 = vrot.lane.b32.xlu0 %v631, 55
        %v643 = vpop.permute.xlu0 %642
        %vm644 = vcmp.lt.s32.totalorder %v259, 55
        %v645 = vsel %vm644, %v641, %v643
        %v646 = vsel %vm644, %v639, %v641
        %v647 = vsel %vm644, %v637, %v639
        %v648 = vsel %vm644, %v643, %v637
        %v649 = vld [vmem:[#allocation5 + $0x80] sm:$0xf]
        %v650 = vld [vmem:[#allocation5 + $0x88] sm:$0xf]
        %v651 = vld [vmem:[#allocation5 + $0x90] sm:$0xf]
        %v652 = vld [vmem:[#allocation5 + $0x98] sm:$0xf]
        %v653 = vmul.f32 %v648, %v649
        %v654 = vmul.f32 %v647, %v650
        %v655 = vmul.f32 %v646, %v651
        %v656 = vmul.f32 %v645, %v652
        %657 = vst [vmem:[#allocation2 + $0x80] sm:$0xf] %v653
        %658 = vst [vmem:[#allocation2 + $0x88] sm:$0xf] %v654
        %659 = vst [vmem:[#allocation2 + $0x90] sm:$0xf] %v655
        %660 = vst [vmem:[#allocation2 + $0x98] sm:$0xf] %v656
        %661 = vst [vmem:[#allocation1] ss:$2 sm:$0xff] %v235
        %s662 = scalar_lea.vmem [#allocation1], 16
        %663 = vst [vmem:[%s662] ss:$2 sm:$0xff] %v236
        %v664 = vld.sshfl [vmem:[#allocation1] sm:$0xff pattern:$0x75316420]
        %v665 = vld.sshfl [vmem:[#allocation1 + $0x8] sm:$0xff pattern:$0x75316420]
        %v666 = vld.sshfl [vmem:[#allocation1 + $0x10] sm:$0xff pattern:$0x75316420]
        %v667 = vld.sshfl [vmem:[#allocation1 + $0x18] sm:$0xff pattern:$0x75316420]
        %672 = vrot.lane.b32.xlu0 %v664, 9
        %v673 = vpop.permute.xlu0 %672
        %674 = vrot.lane.b32.xlu0 %v665, 9
        %v675 = vpop.permute.xlu0 %674
        %676 = vrot.lane.b32.xlu0 %v666, 9
        %v677 = vpop.permute.xlu0 %676
        %678 = vrot.lane.b32.xlu0 %v667, 9
        %v679 = vpop.permute.xlu0 %678
        %vm680 = vcmp.lt.s32.totalorder %v259, 9
        %v681 = vsel %vm680, %v677, %v679
        %v682 = vsel %vm680, %v675, %v677
        %v683 = vsel %vm680, %v673, %v675
        %v684 = vsel %vm680, %v679, %v673
        %v685 = vld [vmem:[#allocation5 + $0x80] sm:$0xf0]
        %v686 = vld [vmem:[#allocation5 + $0x88] sm:$0xf0]
        %v687 = vld [vmem:[#allocation5 + $0x90] sm:$0xf0]
        %v688 = vld [vmem:[#allocation5 + $0x98] sm:$0xf0]
        %v693 = vrot.slane %v685, 4
        %v694 = vrot.slane %v686, 4
        %v695 = vrot.slane %v687, 4
        %v696 = vrot.slane %v688, 4
        %v701 = vmul.f32 %v684, %v693
        %v702 = vmul.f32 %v683, %v694
        %v703 = vmul.f32 %v682, %v695
        %v704 = vmul.f32 %v681, %v696
        %v709 = vrot.slane %v701, 4
        %v710 = vrot.slane %v702, 4
        %v711 = vrot.slane %v703, 4
        %v712 = vrot.slane %v704, 4
        %717 = vst [vmem:[#allocation2 + $0x80] sm:$0xf0] %v709
        %718 = vst [vmem:[#allocation2 + $0x88] sm:$0xf0] %v710
        %719 = vst [vmem:[#allocation2 + $0x90] sm:$0xf0] %v711
        %720 = vst [vmem:[#allocation2 + $0x98] sm:$0xf0] %v712
        %721 = vst [vmem:[#allocation1] ss:$2 sm:$0xff] %v235
        %s722 = scalar_lea.vmem [#allocation1], 16
        %723 = vst [vmem:[%s722] ss:$2 sm:$0xff] %v236
        %v724 = vld.sshfl [vmem:[#allocation1] sm:$0xff pattern:$0x75316420]
        %v725 = vld.sshfl [vmem:[#allocation1 + $0x8] sm:$0xff pattern:$0x75316420]
        %v726 = vld.sshfl [vmem:[#allocation1 + $0x10] sm:$0xff pattern:$0x75316420]
        %v727 = vld.sshfl [vmem:[#allocation1 + $0x18] sm:$0xff pattern:$0x75316420]
        %732 = vrot.lane.b32.xlu0 %v724, 8
        %v733 = vpop.permute.xlu0 %732
        %734 = vrot.lane.b32.xlu0 %v725, 8
        %v735 = vpop.permute.xlu0 %734
        %736 = vrot.lane.b32.xlu0 %v726, 8
        %v737 = vpop.permute.xlu0 %736
        %738 = vrot.lane.b32.xlu0 %v727, 8
        %v739 = vpop.permute.xlu0 %738
        %vm740 = vcmp.lt.s32.totalorder %v259, 8
        %v741 = vsel %vm740, %v737, %v739
        %v742 = vsel %vm740, %v735, %v737
        %v743 = vsel %vm740, %v733, %v735
        %v744 = vsel %vm740, %v739, %v733
        %v745 = vld [vmem:[#allocation5 + $0xa0] sm:$0xf]
        %v746 = vld [vmem:[#allocation5 + $0xa8] sm:$0xf]
        %v747 = vld [vmem:[#allocation5 + $0xb0] sm:$0xf]
        %v748 = vld [vmem:[#allocation5 + $0xb8] sm:$0xf]
        %v749 = vmul.f32 %v744, %v745
        %v750 = vmul.f32 %v743, %v746
        %v751 = vmul.f32 %v742, %v747
        %v752 = vmul.f32 %v741, %v748
        %753 = vst [vmem:[#allocation2 + $0xa0] sm:$0xf] %v749
        %754 = vst [vmem:[#allocation2 + $0xa8] sm:$0xf] %v750
        %755 = vst [vmem:[#allocation2 + $0xb0] sm:$0xf] %v751
        %756 = vst [vmem:[#allocation2 + $0xb8] sm:$0xf] %v752
        %757 = vst [vmem:[#allocation1] ss:$2 sm:$0xff] %v235
        %s758 = scalar_lea.vmem [#allocation1], 16
        %759 = vst [vmem:[%s758] ss:$2 sm:$0xff] %v236
        %v760 = vld.sshfl [vmem:[#allocation1] sm:$0xff pattern:$0x75316420]
        %v761 = vld.sshfl [vmem:[#allocation1 + $0x8] sm:$0xff pattern:$0x75316420]
        %v762 = vld.sshfl [vmem:[#allocation1 + $0x10] sm:$0xff pattern:$0x75316420]
        %v763 = vld.sshfl [vmem:[#allocation1 + $0x18] sm:$0xff pattern:$0x75316420]
        %768 = vrot.lane.b32.xlu0 %v760, 7
        %v769 = vpop.permute.xlu0 %768
        %770 = vrot.lane.b32.xlu0 %v761, 7
        %v771 = vpop.permute.xlu0 %770
        %772 = vrot.lane.b32.xlu0 %v762, 7
        %v773 = vpop.permute.xlu0 %772
        %774 = vrot.lane.b32.xlu0 %v763, 7
        %v775 = vpop.permute.xlu0 %774
        %vm776 = vcmp.lt.s32.totalorder %v259, 7
        %v777 = vsel %vm776, %v773, %v775
        %v778 = vsel %vm776, %v771, %v773
        %v779 = vsel %vm776, %v769, %v771
        %v780 = vsel %vm776, %v775, %v769
        %v781 = vld [vmem:[#allocation5 + $0xa0] sm:$0xf0]
        %v782 = vld [vmem:[#allocation5 + $0xa8] sm:$0xf0]
        %v783 = vld [vmem:[#allocation5 + $0xb0] sm:$0xf0]
        %v784 = vld [vmem:[#allocation5 + $0xb8] sm:$0xf0]
        %v789 = vrot.slane %v781, 4
        %v790 = vrot.slane %v782, 4
        %v791 = vrot.slane %v783, 4
        %v792 = vrot.slane %v784, 4
        %v797 = vmul.f32 %v780, %v789
        %v798 = vmul.f32 %v779, %v790
        %v799 = vmul.f32 %v778, %v791
        %v800 = vmul.f32 %v777, %v792
        %v805 = vrot.slane %v797, 4
        %v806 = vrot.slane %v798, 4
        %v807 = vrot.slane %v799, 4
        %v808 = vrot.slane %v800, 4
        %813 = vst [vmem:[#allocation2 + $0xa0] sm:$0xf0] %v805
        %814 = vst [vmem:[#allocation2 + $0xa8] sm:$0xf0] %v806
        %815 = vst [vmem:[#allocation2 + $0xb0] sm:$0xf0] %v807
        %816 = vst [vmem:[#allocation2 + $0xb8] sm:$0xf0] %v808
        %817 = vst [vmem:[#allocation1] ss:$2 sm:$0xff] %v235
        %s818 = scalar_lea.vmem [#allocation1], 16
        %819 = vst [vmem:[%s818] ss:$2 sm:$0xff] %v236
        %v820 = vld.sshfl [vmem:[#allocation1] sm:$0xff pattern:$0x75316420]
        %v821 = vld.sshfl [vmem:[#allocation1 + $0x8] sm:$0xff pattern:$0x75316420]
        %v822 = vld.sshfl [vmem:[#allocation1 + $0x10] sm:$0xff pattern:$0x75316420]
        %v823 = vld.sshfl [vmem:[#allocation1 + $0x18] sm:$0xff pattern:$0x75316420]
        %828 = vrot.lane.b32.xlu0 %v820, 1
        %v829 = vpop.permute.xlu0 %828
        %830 = vrot.lane.b32.xlu0 %v821, 1
        %v831 = vpop.permute.xlu0 %830
        %832 = vrot.lane.b32.xlu0 %v822, 1
        %v833 = vpop.permute.xlu0 %832
        %834 = vrot.lane.b32.xlu0 %v823, 1
        %v835 = vpop.permute.xlu0 %834
        %vm836 = vcmp.lt.s32.totalorder %v259, 1
        %v837 = vsel %vm836, %v833, %v835
        %v838 = vsel %vm836, %v831, %v833
        %v839 = vsel %vm836, %v829, %v831
        %v840 = vsel %vm836, %v835, %v829
        %v841 = vld [vmem:[#allocation5 + $0xc0] sm:$0xf]
        %v842 = vld [vmem:[#allocation5 + $0xc8] sm:$0xf]
        %v843 = vld [vmem:[#allocation5 + $0xd0] sm:$0xf]
        %v844 = vld [vmem:[#allocation5 + $0xd8] sm:$0xf]
        %v845 = vmul.f32 %v840, %v841
        %v846 = vmul.f32 %v839, %v842
        %v847 = vmul.f32 %v838, %v843
        %v848 = vmul.f32 %v837, %v844
        %849 = vst [vmem:[#allocation2 + $0xc0] sm:$0xf] %v845
        %850 = vst [vmem:[#allocation2 + $0xc8] sm:$0xf] %v846
        %851 = vst [vmem:[#allocation2 + $0xd0] sm:$0xf] %v847
        %852 = vst [vmem:[#allocation2 + $0xd8] sm:$0xf] %v848
        %v853 = vld [vmem:[#allocation5 + $0xc0] sm:$0xf0]
        %v854 = vld [vmem:[#allocation5 + $0xc8] sm:$0xf0]
        %v855 = vld [vmem:[#allocation5 + $0xd0] sm:$0xf0]
        %v856 = vld [vmem:[#allocation5 + $0xd8] sm:$0xf0]
        %861 = vst.sshfl [vmem:[#allocation1] sm:$0xff pattern:$0x75316420] %v853
        %862 = vst.sshfl [vmem:[#allocation1 + $0x8] sm:$0xff pattern:$0x75316420] %v854
        %863 = vst.sshfl [vmem:[#allocation1 + $0x10] sm:$0xff pattern:$0x75316420] %v855
        %864 = vst.sshfl [vmem:[#allocation1 + $0x18] sm:$0xff pattern:$0x75316420] %v856
        %s865 = scalar_lea.vmem [#allocation1], 1
        %v866 = vld [vmem:[%s865] ss:$2 sm:$0xff]
        %s867 = scalar_lea.vmem [#allocation1], 17
        %v868 = vld [vmem:[%s867] ss:$2 sm:$0xff]
        %v871 = vmul.f32 %v235, %v866
        %v872 = vmul.f32 %v236, %v868
        %s875 = scalar_lea.vmem [#allocation1], 1
        %876 = vst [vmem:[%s875] ss:$2 sm:$0xff] %v871
        %s877 = scalar_lea.vmem [#allocation1], 17
        %878 = vst [vmem:[%s877] ss:$2 sm:$0xff] %v872
        %v879 = vld.sshfl [vmem:[#allocation1] sm:$0xff pattern:$0x75316420]
        %v880 = vld.sshfl [vmem:[#allocation1 + $0x8] sm:$0xff pattern:$0x75316420]
        %v881 = vld.sshfl [vmem:[#allocation1 + $0x10] sm:$0xff pattern:$0x75316420]
        %v882 = vld.sshfl [vmem:[#allocation1 + $0x18] sm:$0xff pattern:$0x75316420]
        %887 = vst [vmem:[#allocation2 + $0xc0] sm:$0xf0] %v879
        %888 = vst [vmem:[#allocation2 + $0xc8] sm:$0xf0] %v880
        %889 = vst [vmem:[#allocation2 + $0xd0] sm:$0xf0] %v881
        %890 = vst [vmem:[#allocation2 + $0xd8] sm:$0xf0] %v882
        %891 = vst [vmem:[#allocation1] ss:$2 sm:$0xff] %v235
        %s892 = scalar_lea.vmem [#allocation1], 16
        %893 = vst [vmem:[%s892] ss:$2 sm:$0xff] %v236
        %v894 = vld.sshfl [vmem:[#allocation1] sm:$0xff pattern:$0x75316420]
        %v895 = vld.sshfl [vmem:[#allocation1 + $0x8] sm:$0xff pattern:$0x75316420]
        %v896 = vld.sshfl [vmem:[#allocation1 + $0x10] sm:$0xff pattern:$0x75316420]
        %v897 = vld.sshfl [vmem:[#allocation1 + $0x18] sm:$0xff pattern:$0x75316420]
        %902 = vrot.lane.b32.xlu0 %v894, 127
        %v903 = vpop.permute.xlu0 %902
        %904 = vrot.lane.b32.xlu0 %v895, 127
        %v905 = vpop.permute.xlu0 %904
        %906 = vrot.lane.b32.xlu0 %v896, 127
        %v907 = vpop.permute.xlu0 %906
        %908 = vrot.lane.b32.xlu0 %v897, 127
        %v909 = vpop.permute.xlu0 %908
        %vm910 = vcmp.lt.s32.totalorder %v259, 127
        %v911 = vsel %vm910, %v907, %v909
        %v912 = vsel %vm910, %v905, %v907
        %v913 = vsel %vm910, %v903, %v905
        %v914 = vsel %vm910, %v909, %v903
        %v915 = vld [vmem:[#allocation5 + $0xe0] sm:$0xf]
        %v916 = vld [vmem:[#allocation5 + $0xe8] sm:$0xf]
        %v917 = vld [vmem:[#allocation5 + $0xf0] sm:$0xf]
        %v918 = vld [vmem:[#allocation5 + $0xf8] sm:$0xf]
        %v919 = vmul.f32 %v913, %v915
        %v920 = vmul.f32 %v912, %v916
        %v921 = vmul.f32 %v911, %v917
        %v922 = vmul.f32 %v914, %v918
        %923 = vst [vmem:[#allocation2 + $0xe0] sm:$0xf] %v919
        %924 = vst [vmem:[#allocation2 + $0xe8] sm:$0xf] %v920
        %925 = vst [vmem:[#allocation2 + $0xf0] sm:$0xf] %v921
        %926 = vst [vmem:[#allocation2 + $0xf8] sm:$0xf] %v922
        %927 = vst [vmem:[#allocation1] ss:$2 sm:$0xff] %v235
        %s928 = scalar_lea.vmem [#allocation1], 16
        %929 = vst [vmem:[%s928] ss:$2 sm:$0xff] %v236
        %v930 = vld.sshfl [vmem:[#allocation1] sm:$0xff pattern:$0x75316420]
        %v931 = vld.sshfl [vmem:[#allocation1 + $0x8] sm:$0xff pattern:$0x75316420]
        %v932 = vld.sshfl [vmem:[#allocation1 + $0x10] sm:$0xff pattern:$0x75316420]
        %v933 = vld.sshfl [vmem:[#allocation1 + $0x18] sm:$0xff pattern:$0x75316420]
        %938 = vrot.lane.b32.xlu0 %v930, 121
        %v939 = vpop.permute.xlu0 %938
        %940 = vrot.lane.b32.xlu0 %v931, 121
        %v941 = vpop.permute.xlu0 %940
        %942 = vrot.lane.b32.xlu0 %v932, 121
        %v943 = vpop.permute.xlu0 %942
        %944 = vrot.lane.b32.xlu0 %v933, 121
        %v945 = vpop.permute.xlu0 %944
        %vm946 = vcmp.lt.s32.totalorder %v259, 121
        %v947 = vsel %vm946, %v943, %v945
        %v948 = vsel %vm946, %v941, %v943
        %v949 = vsel %vm946, %v939, %v941
        %v950 = vsel %vm946, %v945, %v939
        %v951 = vld [vmem:[#allocation5 + $0xe0] sm:$0xf0]
        %v952 = vld [vmem:[#allocation5 + $0xe8] sm:$0xf0]
        %v953 = vld [vmem:[#allocation5 + $0xf0] sm:$0xf0]
        %v954 = vld [vmem:[#allocation5 + $0xf8] sm:$0xf0]
        %v959 = vrot.slane %v951, 4
        %v960 = vrot.slane %v952, 4
        %v961 = vrot.slane %v953, 4
        %v962 = vrot.slane %v954, 4
        %v967 = vmul.f32 %v949, %v959
        %v968 = vmul.f32 %v948, %v960
        %v969 = vmul.f32 %v947, %v961
        %v970 = vmul.f32 %v950, %v962
        %v975 = vrot.slane %v967, 4
        %v976 = vrot.slane %v968, 4
        %v977 = vrot.slane %v969, 4
        %v978 = vrot.slane %v970, 4
        %983 = vst [vmem:[#allocation2 + $0xe0] sm:$0xf0] %v975
        %984 = vst [vmem:[#allocation2 + $0xe8] sm:$0xf0] %v976
        %985 = vst [vmem:[#allocation2 + $0xf0] sm:$0xf0] %v977
        %986 = vst [vmem:[#allocation2 + $0xf8] sm:$0xf0] %v978
        %987 = vst [vmem:[#allocation1] ss:$2 sm:$0xff] %v235
        %s988 = scalar_lea.vmem [#allocation1], 16
        %989 = vst [vmem:[%s988] ss:$2 sm:$0xff] %v236
        %v990 = vld.sshfl [vmem:[#allocation1] sm:$0xff pattern:$0x75316420]
        %v991 = vld.sshfl [vmem:[#allocation1 + $0x8] sm:$0xff pattern:$0x75316420]
        %v992 = vld.sshfl [vmem:[#allocation1 + $0x10] sm:$0xff pattern:$0x75316420]
        %v993 = vld.sshfl [vmem:[#allocation1 + $0x18] sm:$0xff pattern:$0x75316420]
        %998 = vrot.lane.b32.xlu0 %v990, 120
        %v999 = vpop.permute.xlu0 %998
        %1000 = vrot.lane.b32.xlu0 %v991, 120
        %v1001 = vpop.permute.xlu0 %1000
        %1002 = vrot.lane.b32.xlu0 %v992, 120
        %v1003 = vpop.permute.xlu0 %1002
        %1004 = vrot.lane.b32.xlu0 %v993, 120
        %v1005 = vpop.permute.xlu0 %1004
        %vm1006 = vcmp.lt.s32.totalorder %v259, 120
        %v1007 = vsel %vm1006, %v1003, %v1005
        %v1008 = vsel %vm1006, %v1001, %v1003
        %v1009 = vsel %vm1006, %v999, %v1001
        %v1010 = vsel %vm1006, %v1005, %v999
        %v1011 = vld [vmem:[#allocation5 + $0x100] sm:$0xf]
        %v1012 = vld [vmem:[#allocation5 + $0x108] sm:$0xf]
        %v1013 = vld [vmem:[#allocation5 + $0x110] sm:$0xf]
        %v1014 = vld [vmem:[#allocation5 + $0x118] sm:$0xf]
        %v1015 = vmul.f32 %v1009, %v1011
        %v1016 = vmul.f32 %v1008, %v1012
        %v1017 = vmul.f32 %v1007, %v1013
        %v1018 = vmul.f32 %v1010, %v1014
        %1019 = vst [vmem:[#allocation2 + $0x100] sm:$0xf] %v1015
        %1020 = vst [vmem:[#allocation2 + $0x108] sm:$0xf] %v1016
        %1021 = vst [vmem:[#allocation2 + $0x110] sm:$0xf] %v1017
        %1022 = vst [vmem:[#allocation2 + $0x118] sm:$0xf] %v1018
        %1023 = vst [vmem:[#allocation1] ss:$2 sm:$0xff] %v235
        %s1024 = scalar_lea.vmem [#allocation1], 16
        %1025 = vst [vmem:[%s1024] ss:$2 sm:$0xff] %v236
        %v1026 = vld.sshfl [vmem:[#allocation1] sm:$0xff pattern:$0x75316420]
        %v1027 = vld.sshfl [vmem:[#allocation1 + $0x8] sm:$0xff pattern:$0x75316420]
        %v1028 = vld.sshfl [vmem:[#allocation1 + $0x10] sm:$0xff pattern:$0x75316420]
        %v1029 = vld.sshfl [vmem:[#allocation1 + $0x18] sm:$0xff pattern:$0x75316420]
        %1034 = vrot.lane.b32.xlu0 %v1026, 119
        %v1035 = vpop.permute.xlu0 %1034
        %1036 = vrot.lane.b32.xlu0 %v1027, 119
        %v1037 = vpop.permute.xlu0 %1036
        %1038 = vrot.lane.b32.xlu0 %v1028, 119
        %v1039 = vpop.permute.xlu0 %1038
        %1040 = vrot.lane.b32.xlu0 %v1029, 119
        %v1041 = vpop.permute.xlu0 %1040
        %vm1042 = vcmp.lt.s32.totalorder %v259, 119
        %v1043 = vsel %vm1042, %v1039, %v1041
        %v1044 = vsel %vm1042, %v1037, %v1039
        %v1045 = vsel %vm1042, %v1035, %v1037
        %v1046 = vsel %vm1042, %v1041, %v1035
        %v1047 = vld [vmem:[#allocation5 + $0x100] sm:$0xf0]
        %v1048 = vld [vmem:[#allocation5 + $0x108] sm:$0xf0]
        %v1049 = vld [vmem:[#allocation5 + $0x110] sm:$0xf0]
        %v1050 = vld [vmem:[#allocation5 + $0x118] sm:$0xf0]
        %v1055 = vrot.slane %v1047, 4
        %v1056 = vrot.slane %v1048, 4
        %v1057 = vrot.slane %v1049, 4
        %v1058 = vrot.slane %v1050, 4
        %v1063 = vmul.f32 %v1045, %v1055
        %v1064 = vmul.f32 %v1044, %v1056
        %v1065 = vmul.f32 %v1043, %v1057
        %v1066 = vmul.f32 %v1046, %v1058
        %v1071 = vrot.slane %v1063, 4
        %v1072 = vrot.slane %v1064, 4
        %v1073 = vrot.slane %v1065, 4
        %v1074 = vrot.slane %v1066, 4
        %1079 = vst [vmem:[#allocation2 + $0x100] sm:$0xf0] %v1071
        %1080 = vst [vmem:[#allocation2 + $0x108] sm:$0xf0] %v1072
        %1081 = vst [vmem:[#allocation2 + $0x110] sm:$0xf0] %v1073
        %1082 = vst [vmem:[#allocation2 + $0x118] sm:$0xf0] %v1074
        %1083 = vst [vmem:[#allocation1] ss:$2 sm:$0xff] %v235
        %s1084 = scalar_lea.vmem [#allocation1], 16
        %1085 = vst [vmem:[%s1084] ss:$2 sm:$0xff] %v236
        %v1086 = vld.sshfl [vmem:[#allocation1] sm:$0xff pattern:$0x75316420]
        %v1087 = vld.sshfl [vmem:[#allocation1 + $0x8] sm:$0xff pattern:$0x75316420]
        %v1088 = vld.sshfl [vmem:[#allocation1 + $0x10] sm:$0xff pattern:$0x75316420]
        %v1089 = vld.sshfl [vmem:[#allocation1 + $0x18] sm:$0xff pattern:$0x75316420]
        %1094 = vrot.lane.b32.xlu0 %v1086, 73
        %v1095 = vpop.permute.xlu0 %1094
        %1096 = vrot.lane.b32.xlu0 %v1087, 73
        %v1097 = vpop.permute.xlu0 %1096
        %1098 = vrot.lane.b32.xlu0 %v1088, 73
        %v1099 = vpop.permute.xlu0 %1098
        %1100 = vrot.lane.b32.xlu0 %v1089, 73
        %v1101 = vpop.permute.xlu0 %1100
        %v1102 = vsel %vm260, %v1099, %v1101
        %v1103 = vsel %vm260, %v1097, %v1099
        %v1104 = vsel %vm260, %v1095, %v1097
        %v1105 = vsel %vm260, %v1101, %v1095
        %v1106 = vld [vmem:[#allocation5 + $0x120] sm:$0xf]
        %v1107 = vld [vmem:[#allocation5 + $0x128] sm:$0xf]
        %v1108 = vld [vmem:[#allocation5 + $0x130] sm:$0xf]
        %v1109 = vld [vmem:[#allocation5 + $0x138] sm:$0xf]
        %v1110 = vmul.f32 %v1104, %v1106
        %v1111 = vmul.f32 %v1103, %v1107
        %v1112 = vmul.f32 %v1102, %v1108
        %v1113 = vmul.f32 %v1105, %v1109
        %1114 = vst [vmem:[#allocation2 + $0x120] sm:$0xf] %v1110
        %1115 = vst [vmem:[#allocation2 + $0x128] sm:$0xf] %v1111
        %1116 = vst [vmem:[#allocation2 + $0x130] sm:$0xf] %v1112
        %1117 = vst [vmem:[#allocation2 + $0x138] sm:$0xf] %v1113
        %1118 = vst [vmem:[#allocation1] ss:$2 sm:$0xff] %v235
        %s1119 = scalar_lea.vmem [#allocation1], 16
        %1120 = vst [vmem:[%s1119] ss:$2 sm:$0xff] %v236
        %v1121 = vld.sshfl [vmem:[#allocation1] sm:$0xff pattern:$0x75316420]
        %v1122 = vld.sshfl [vmem:[#allocation1 + $0x8] sm:$0xff pattern:$0x75316420]
        %v1123 = vld.sshfl [vmem:[#allocation1 + $0x10] sm:$0xff pattern:$0x75316420]
        %v1124 = vld.sshfl [vmem:[#allocation1 + $0x18] sm:$0xff pattern:$0x75316420]
        %1129 = vrot.lane.b32.xlu0 %v1121, 72
        %v1130 = vpop.permute.xlu0 %1129
        %1131 = vrot.lane.b32.xlu0 %v1122, 72
        %v1132 = vpop.permute.xlu0 %1131
        %1133 = vrot.lane.b32.xlu0 %v1123, 72
        %v1134 = vpop.permute.xlu0 %1133
        %1135 = vrot.lane.b32.xlu0 %v1124, 72
        %v1136 = vpop.permute.xlu0 %1135
        %v1137 = vsel %vm296, %v1134, %v1136
        %v1138 = vsel %vm296, %v1132, %v1134
        %v1139 = vsel %vm296, %v1130, %v1132
        %v1140 = vsel %vm296, %v1136, %v1130
        %v1141 = vld [vmem:[#allocation5 + $0x120] sm:$0xf0]
        %v1142 = vld [vmem:[#allocation5 + $0x128] sm:$0xf0]
        %v1143 = vld [vmem:[#allocation5 + $0x130] sm:$0xf0]
        %v1144 = vld [vmem:[#allocation5 + $0x138] sm:$0xf0]
        %v1149 = vrot.slane %v1141, 4
        %v1150 = vrot.slane %v1142, 4
        %v1151 = vrot.slane %v1143, 4
        %v1152 = vrot.slane %v1144, 4
        %v1157 = vmul.f32 %v1139, %v1149
        %v1158 = vmul.f32 %v1138, %v1150
        %v1159 = vmul.f32 %v1137, %v1151
        %v1160 = vmul.f32 %v1140, %v1152
        %v1165 = vrot.slane %v1157, 4
        %v1166 = vrot.slane %v1158, 4
        %v1167 = vrot.slane %v1159, 4
        %v1168 = vrot.slane %v1160, 4
        %1173 = vst [vmem:[#allocation2 + $0x120] sm:$0xf0] %v1165
        %1174 = vst [vmem:[#allocation2 + $0x128] sm:$0xf0] %v1166
        %1175 = vst [vmem:[#allocation2 + $0x130] sm:$0xf0] %v1167
        %1176 = vst [vmem:[#allocation2 + $0x138] sm:$0xf0] %v1168
        %1177 = vst [vmem:[#allocation1] ss:$2 sm:$0xff] %v235
        %s1178 = scalar_lea.vmem [#allocation1], 16
        %1179 = vst [vmem:[%s1178] ss:$2 sm:$0xff] %v236
        %v1180 = vld.sshfl [vmem:[#allocation1] sm:$0xff pattern:$0x75316420]
        %v1181 = vld.sshfl [vmem:[#allocation1 + $0x8] sm:$0xff pattern:$0x75316420]
        %v1182 = vld.sshfl [vmem:[#allocation1 + $0x10] sm:$0xff pattern:$0x75316420]
        %v1183 = vld.sshfl [vmem:[#allocation1 + $0x18] sm:$0xff pattern:$0x75316420]
        %1188 = vrot.lane.b32.xlu0 %v1180, 71
        %v1189 = vpop.permute.xlu0 %1188
        %1190 = vrot.lane.b32.xlu0 %v1181, 71
        %v1191 = vpop.permute.xlu0 %1190
        %1192 = vrot.lane.b32.xlu0 %v1182, 71
        %v1193 = vpop.permute.xlu0 %1192
        %1194 = vrot.lane.b32.xlu0 %v1183, 71
        %v1195 = vpop.permute.xlu0 %1194
        %v1196 = vsel %vm356, %v1193, %v1195
        %v1197 = vsel %vm356, %v1191, %v1193
        %v1198 = vsel %vm356, %v1189, %v1191
        %v1199 = vsel %vm356, %v1195, %v1189
        %v1200 = vld [vmem:[#allocation5 + $0x140] sm:$0xf]
        %v1201 = vld [vmem:[#allocation5 + $0x148] sm:$0xf]
        %v1202 = vld [vmem:[#allocation5 + $0x150] sm:$0xf]
        %v1203 = vld [vmem:[#allocation5 + $0x158] sm:$0xf]
        %v1204 = vmul.f32 %v1198, %v1200
        %v1205 = vmul.f32 %v1197, %v1201
        %v1206 = vmul.f32 %v1196, %v1202
        %v1207 = vmul.f32 %v1199, %v1203
        %1208 = vst [vmem:[#allocation2 + $0x140] sm:$0xf] %v1204
        %1209 = vst [vmem:[#allocation2 + $0x148] sm:$0xf] %v1205
        %1210 = vst [vmem:[#allocation2 + $0x150] sm:$0xf] %v1206
        %1211 = vst [vmem:[#allocation2 + $0x158] sm:$0xf] %v1207
        %1212 = vst [vmem:[#allocation1] ss:$2 sm:$0xff] %v235
        %s1213 = scalar_lea.vmem [#allocation1], 16
        %1214 = vst [vmem:[%s1213] ss:$2 sm:$0xff] %v236
        %v1215 = vld.sshfl [vmem:[#allocation1] sm:$0xff pattern:$0x75316420]
        %v1216 = vld.sshfl [vmem:[#allocation1 + $0x8] sm:$0xff pattern:$0x75316420]
        %v1217 = vld.sshfl [vmem:[#allocation1 + $0x10] sm:$0xff pattern:$0x75316420]
        %v1218 = vld.sshfl [vmem:[#allocation1 + $0x18] sm:$0xff pattern:$0x75316420]
        %1223 = vrot.lane.b32.xlu0 %v1215, 65
        %v1224 = vpop.permute.xlu0 %1223
        %1225 = vrot.lane.b32.xlu0 %v1216, 65
        %v1226 = vpop.permute.xlu0 %1225
        %1227 = vrot.lane.b32.xlu0 %v1217, 65
        %v1228 = vpop.permute.xlu0 %1227
        %1229 = vrot.lane.b32.xlu0 %v1218, 65
        %v1230 = vpop.permute.xlu0 %1229
        %v1231 = vsel %vm392, %v1228, %v1230
        %v1232 = vsel %vm392, %v1226, %v1228
        %v1233 = vsel %vm392, %v1224, %v1226
        %v1234 = vsel %vm392, %v1230, %v1224
        %v1235 = vld [vmem:[#allocation5 + $0x140] sm:$0xf0]
        %v1236 = vld [vmem:[#allocation5 + $0x148] sm:$0xf0]
        %v1237 = vld [vmem:[#allocation5 + $0x150] sm:$0xf0]
        %v1238 = vld [vmem:[#allocation5 + $0x158] sm:$0xf0]
        %v1243 = vrot.slane %v1235, 4
        %v1244 = vrot.slane %v1236, 4
        %v1245 = vrot.slane %v1237, 4
        %v1246 = vrot.slane %v1238, 4
        %v1251 = vmul.f32 %v1233, %v1243
        %v1252 = vmul.f32 %v1232, %v1244
        %v1253 = vmul.f32 %v1231, %v1245
        %v1254 = vmul.f32 %v1234, %v1246
        %v1259 = vrot.slane %v1251, 4
        %v1260 = vrot.slane %v1252, 4
        %v1261 = vrot.slane %v1253, 4
        %v1262 = vrot.slane %v1254, 4
        %1267 = vst [vmem:[#allocation2 + $0x140] sm:$0xf0] %v1259
        %1268 = vst [vmem:[#allocation2 + $0x148] sm:$0xf0] %v1260
        %1269 = vst [vmem:[#allocation2 + $0x150] sm:$0xf0] %v1261
        %1270 = vst [vmem:[#allocation2 + $0x158] sm:$0xf0] %v1262
        %1271 = vst [vmem:[#allocation1] ss:$2 sm:$0xff] %v235
        %s1272 = scalar_lea.vmem [#allocation1], 16
        %1273 = vst [vmem:[%s1272] ss:$2 sm:$0xff] %v236
        %v1274 = vld.sshfl [vmem:[#allocation1] sm:$0xff pattern:$0x75316420]
        %v1275 = vld.sshfl [vmem:[#allocation1 + $0x8] sm:$0xff pattern:$0x75316420]
        %v1276 = vld.sshfl [vmem:[#allocation1 + $0x10] sm:$0xff pattern:$0x75316420]
        %v1277 = vld.sshfl [vmem:[#allocation1 + $0x18] sm:$0xff pattern:$0x75316420]
        %1282 = vrot.lane.b32.xlu0 %v1274, 64
        %v1283 = vpop.permute.xlu0 %1282
        %1284 = vrot.lane.b32.xlu0 %v1275, 64
        %v1285 = vpop.permute.xlu0 %1284
        %1286 = vrot.lane.b32.xlu0 %v1276, 64
        %v1287 = vpop.permute.xlu0 %1286
        %1288 = vrot.lane.b32.xlu0 %v1277, 64
        %v1289 = vpop.permute.xlu0 %1288
        %v1290 = vsel %vm452, %v1287, %v1289
        %v1291 = vsel %vm452, %v1285, %v1287
        %v1292 = vsel %vm452, %v1283, %v1285
        %v1293 = vsel %vm452, %v1289, %v1283
        %v1294 = vld [vmem:[#allocation5 + $0x160] sm:$0xf]
        %v1295 = vld [vmem:[#allocation5 + $0x168] sm:$0xf]
        %v1296 = vld [vmem:[#allocation5 + $0x170] sm:$0xf]
        %v1297 = vld [vmem:[#allocation5 + $0x178] sm:$0xf]
        %v1298 = vmul.f32 %v1292, %v1294
        %v1299 = vmul.f32 %v1291, %v1295
        %v1300 = vmul.f32 %v1290, %v1296
        %v1301 = vmul.f32 %v1293, %v1297
        %1302 = vst [vmem:[#allocation2 + $0x160] sm:$0xf] %v1298
        %1303 = vst [vmem:[#allocation2 + $0x168] sm:$0xf] %v1299
        %1304 = vst [vmem:[#allocation2 + $0x170] sm:$0xf] %v1300
        %1305 = vst [vmem:[#allocation2 + $0x178] sm:$0xf] %v1301
        %1306 = vst [vmem:[#allocation1] ss:$2 sm:$0xff] %v235
        %s1307 = scalar_lea.vmem [#allocation1], 16
        %1308 = vst [vmem:[%s1307] ss:$2 sm:$0xff] %v236
        %v1309 = vld.sshfl [vmem:[#allocation1] sm:$0xff pattern:$0x75316420]
        %v1310 = vld.sshfl [vmem:[#allocation1 + $0x8] sm:$0xff pattern:$0x75316420]
        %v1311 = vld.sshfl [vmem:[#allocation1 + $0x10] sm:$0xff pattern:$0x75316420]
        %v1312 = vld.sshfl [vmem:[#allocation1 + $0x18] sm:$0xff pattern:$0x75316420]
        %1317 = vrot.lane.b32.xlu0 %v1309, 63
        %v1318 = vpop.permute.xlu0 %1317
        %1319 = vrot.lane.b32.xlu0 %v1310, 63
        %v1320 = vpop.permute.xlu0 %1319
        %1321 = vrot.lane.b32.xlu0 %v1311, 63
        %v1322 = vpop.permute.xlu0 %1321
        %1323 = vrot.lane.b32.xlu0 %v1312, 63
        %v1324 = vpop.permute.xlu0 %1323
        %v1325 = vsel %vm488, %v1322, %v1324
        %v1326 = vsel %vm488, %v1320, %v1322
        %v1327 = vsel %vm488, %v1318, %v1320
        %v1328 = vsel %vm488, %v1324, %v1318
        %v1329 = vld [vmem:[#allocation5 + $0x160] sm:$0xf0]
        %v1330 = vld [vmem:[#allocation5 + $0x168] sm:$0xf0]
        %v1331 = vld [vmem:[#allocation5 + $0x170] sm:$0xf0]
        %v1332 = vld [vmem:[#allocation5 + $0x178] sm:$0xf0]
        %v1337 = vrot.slane %v1329, 4
        %v1338 = vrot.slane %v1330, 4
        %v1339 = vrot.slane %v1331, 4
        %v1340 = vrot.slane %v1332, 4
        %v1345 = vmul.f32 %v1327, %v1337
        %v1346 = vmul.f32 %v1326, %v1338
        %v1347 = vmul.f32 %v1325, %v1339
        %v1348 = vmul.f32 %v1328, %v1340
        %v1353 = vrot.slane %v1345, 4
        %v1354 = vrot.slane %v1346, 4
        %v1355 = vrot.slane %v1347, 4
        %v1356 = vrot.slane %v1348, 4
        %1361 = vst [vmem:[#allocation2 + $0x160] sm:$0xf0] %v1353
        %1362 = vst [vmem:[#allocation2 + $0x168] sm:$0xf0] %v1354
        %1363 = vst [vmem:[#allocation2 + $0x170] sm:$0xf0] %v1355
        %1364 = vst [vmem:[#allocation2 + $0x178] sm:$0xf0] %v1356
        %1365 = vst [vmem:[#allocation1] ss:$2 sm:$0xff] %v235
        %s1366 = scalar_lea.vmem [#allocation1], 16
        %1367 = vst [vmem:[%s1366] ss:$2 sm:$0xff] %v236
        %v1368 = vld.sshfl [vmem:[#allocation1] sm:$0xff pattern:$0x75316420]
        %v1369 = vld.sshfl [vmem:[#allocation1 + $0x8] sm:$0xff pattern:$0x75316420]
        %v1370 = vld.sshfl [vmem:[#allocation1 + $0x10] sm:$0xff pattern:$0x75316420]
        %v1371 = vld.sshfl [vmem:[#allocation1 + $0x18] sm:$0xff pattern:$0x75316420]
        %1376 = vrot.lane.b32.xlu0 %v1368, 57
        %v1377 = vpop.permute.xlu0 %1376
        %1378 = vrot.lane.b32.xlu0 %v1369, 57
        %v1379 = vpop.permute.xlu0 %1378
        %1380 = vrot.lane.b32.xlu0 %v1370, 57
        %v1381 = vpop.permute.xlu0 %1380
        %1382 = vrot.lane.b32.xlu0 %v1371, 57
        %v1383 = vpop.permute.xlu0 %1382
        %v1384 = vsel %vm548, %v1381, %v1383
        %v1385 = vsel %vm548, %v1379, %v1381
        %v1386 = vsel %vm548, %v1377, %v1379
        %v1387 = vsel %vm548, %v1383, %v1377
        %v1388 = vld [vmem:[#allocation5 + $0x180] sm:$0xf]
        %v1389 = vld [vmem:[#allocation5 + $0x188] sm:$0xf]
        %v1390 = vld [vmem:[#allocation5 + $0x190] sm:$0xf]
        %v1391 = vld [vmem:[#allocation5 + $0x198] sm:$0xf]
        %v1392 = vmul.f32 %v1386, %v1388
        %v1393 = vmul.f32 %v1385, %v1389
        %v1394 = vmul.f32 %v1384, %v1390
        %v1395 = vmul.f32 %v1387, %v1391
        %1396 = vst [vmem:[#allocation2 + $0x180] sm:$0xf] %v1392
        %1397 = vst [vmem:[#allocation2 + $0x188] sm:$0xf] %v1393
        %1398 = vst [vmem:[#allocation2 + $0x190] sm:$0xf] %v1394
        %1399 = vst [vmem:[#allocation2 + $0x198] sm:$0xf] %v1395
        %1400 = vst [vmem:[#allocation1] ss:$2 sm:$0xff] %v235
        %s1401 = scalar_lea.vmem [#allocation1], 16
        %1402 = vst [vmem:[%s1401] ss:$2 sm:$0xff] %v236
        %v1403 = vld.sshfl [vmem:[#allocation1] sm:$0xff pattern:$0x75316420]
        %v1404 = vld.sshfl [vmem:[#allocation1 + $0x8] sm:$0xff pattern:$0x75316420]
        %v1405 = vld.sshfl [vmem:[#allocation1 + $0x10] sm:$0xff pattern:$0x75316420]
        %v1406 = vld.sshfl [vmem:[#allocation1 + $0x18] sm:$0xff pattern:$0x75316420]
        %1411 = vrot.lane.b32.xlu0 %v1403, 56
        %v1412 = vpop.permute.xlu0 %1411
        %1413 = vrot.lane.b32.xlu0 %v1404, 56
        %v1414 = vpop.permute.xlu0 %1413
        %1415 = vrot.lane.b32.xlu0 %v1405, 56
        %v1416 = vpop.permute.xlu0 %1415
        %1417 = vrot.lane.b32.xlu0 %v1406, 56
        %v1418 = vpop.permute.xlu0 %1417
        %v1419 = vsel %vm584, %v1416, %v1418
        %v1420 = vsel %vm584, %v1414, %v1416
        %v1421 = vsel %vm584, %v1412, %v1414
        %v1422 = vsel %vm584, %v1418, %v1412
        %v1423 = vld [vmem:[#allocation5 + $0x180] sm:$0xf0]
        %v1424 = vld [vmem:[#allocation5 + $0x188] sm:$0xf0]
        %v1425 = vld [vmem:[#allocation5 + $0x190] sm:$0xf0]
        %v1426 = vld [vmem:[#allocation5 + $0x198] sm:$0xf0]
        %v1431 = vrot.slane %v1423, 4
        %v1432 = vrot.slane %v1424, 4
        %v1433 = vrot.slane %v1425, 4
        %v1434 = vrot.slane %v1426, 4
        %v1439 = vmul.f32 %v1421, %v1431
        %v1440 = vmul.f32 %v1420, %v1432
        %v1441 = vmul.f32 %v1419, %v1433
        %v1442 = vmul.f32 %v1422, %v1434
        %v1447 = vrot.slane %v1439, 4
        %v1448 = vrot.slane %v1440, 4
        %v1449 = vrot.slane %v1441, 4
        %v1450 = vrot.slane %v1442, 4
        %1455 = vst [vmem:[#allocation2 + $0x180] sm:$0xf0] %v1447
        %1456 = vst [vmem:[#allocation2 + $0x188] sm:$0xf0] %v1448
        %1457 = vst [vmem:[#allocation2 + $0x190] sm:$0xf0] %v1449
        %1458 = vst [vmem:[#allocation2 + $0x198] sm:$0xf0] %v1450
        %1459 = vst [vmem:[#allocation1] ss:$2 sm:$0xff] %v235
        %s1460 = scalar_lea.vmem [#allocation1], 16
        %1461 = vst [vmem:[%s1460] ss:$2 sm:$0xff] %v236
        %v1462 = vld.sshfl [vmem:[#allocation1] sm:$0xff pattern:$0x75316420]
        %v1463 = vld.sshfl [vmem:[#allocation1 + $0x8] sm:$0xff pattern:$0x75316420]
        %v1464 = vld.sshfl [vmem:[#allocation1 + $0x10] sm:$0xff pattern:$0x75316420]
        %v1465 = vld.sshfl [vmem:[#allocation1 + $0x18] sm:$0xff pattern:$0x75316420]
        %1470 = vrot.lane.b32.xlu0 %v1462, 55
        %v1471 = vpop.permute.xlu0 %1470
        %1472 = vrot.lane.b32.xlu0 %v1463, 55
        %v1473 = vpop.permute.xlu0 %1472
        %1474 = vrot.lane.b32.xlu0 %v1464, 55
        %v1475 = vpop.permute.xlu0 %1474
        %1476 = vrot.lane.b32.xlu0 %v1465, 55
        %v1477 = vpop.permute.xlu0 %1476
        %v1478 = vsel %vm644, %v1475, %v1477
        %v1479 = vsel %vm644, %v1473, %v1475
        %v1480 = vsel %vm644, %v1471, %v1473
        %v1481 = vsel %vm644, %v1477, %v1471
        %v1482 = vld [vmem:[#allocation5 + $0x1a0] sm:$0xf]
        %v1483 = vld [vmem:[#allocation5 + $0x1a8] sm:$0xf]
        %v1484 = vld [vmem:[#allocation5 + $0x1b0] sm:$0xf]
        %v1485 = vld [vmem:[#allocation5 + $0x1b8] sm:$0xf]
        %v1486 = vmul.f32 %v1480, %v1482
        %v1487 = vmul.f32 %v1479, %v1483
        %v1488 = vmul.f32 %v1478, %v1484
        %v1489 = vmul.f32 %v1481, %v1485
        %1490 = vst [vmem:[#allocation2 + $0x1a0] sm:$0xf] %v1486
        %1491 = vst [vmem:[#allocation2 + $0x1a8] sm:$0xf] %v1487
        %1492 = vst [vmem:[#allocation2 + $0x1b0] sm:$0xf] %v1488
        %1493 = vst [vmem:[#allocation2 + $0x1b8] sm:$0xf] %v1489
        %v1494 = vld [vmem:[%s1] sm:$0xff]
        %v1495 = vld [vmem:[#allocation2] sm:$0xff]
        %v1496 = vld [vmem:[#allocation2 + $0x8] sm:$0xff]
        %v1497 = vld [vmem:[#allocation2 + $0x10] sm:$0xff]
        %v1498 = vld [vmem:[#allocation2 + $0x18] sm:$0xff]
        %v1499 = vld [vmem:[#allocation2 + $0x20] sm:$0xff]
        %v1500 = vld [vmem:[#allocation2 + $0x28] sm:$0xff]
        %v1501 = vld [vmem:[#allocation2 + $0x30] sm:$0xff]
        %v1502 = vld [vmem:[#allocation2 + $0x38] sm:$0xff]
        %v1503 = vld [vmem:[#allocation2 + $0x40] sm:$0xff]
        %v1504 = vld [vmem:[#allocation2 + $0x48] sm:$0xff]
        %v1505 = vld [vmem:[#allocation2 + $0x50] sm:$0xff]
        %v1506 = vld [vmem:[#allocation2 + $0x58] sm:$0xff]
        %v1507 = vld [vmem:[#allocation2 + $0x60] sm:$0xff]
        %v1508 = vld [vmem:[#allocation2 + $0x68] sm:$0xff]
        %v1509 = vld [vmem:[#allocation2 + $0x70] sm:$0xff]
        %v1510 = vld [vmem:[#allocation2 + $0x78] sm:$0xff]
        %v1511 = vld [vmem:[#allocation2 + $0x80] sm:$0xff]
        %v1512 = vld [vmem:[#allocation2 + $0x88] sm:$0xff]
        %v1513 = vld [vmem:[#allocation2 + $0x90] sm:$0xff]
        %v1514 = vld [vmem:[#allocation2 + $0x98] sm:$0xff]
        %v1515 = vld [vmem:[#allocation2 + $0xa0] sm:$0xff]
        %v1516 = vld [vmem:[#allocation2 + $0xa8] sm:$0xff]
        %v1517 = vld [vmem:[#allocation2 + $0xb0] sm:$0xff]
        %v1518 = vld [vmem:[#allocation2 + $0xb8] sm:$0xff]
        %v1519 = vld [vmem:[#allocation2 + $0xc0] sm:$0xff]
        %v1520 = vld [vmem:[#allocation2 + $0xc8] sm:$0xff]
        %v1521 = vld [vmem:[#allocation2 + $0xd0] sm:$0xff]
        %v1522 = vld [vmem:[#allocation2 + $0xd8] sm:$0xff]
        %v1523 = vld [vmem:[#allocation2 + $0xe0] sm:$0xff]
        %v1524 = vld [vmem:[#allocation2 + $0xe8] sm:$0xff]
        %v1525 = vld [vmem:[#allocation2 + $0xf0] sm:$0xff]
        %v1526 = vld [vmem:[#allocation2 + $0xf8] sm:$0xff]
        %v1527 = vld [vmem:[#allocation2 + $0x100] sm:$0xff]
        %v1528 = vld [vmem:[#allocation2 + $0x108] sm:$0xff]
        %v1529 = vld [vmem:[#allocation2 + $0x110] sm:$0xff]
        %v1530 = vld [vmem:[#allocation2 + $0x118] sm:$0xff]
        %v1531 = vld [vmem:[#allocation2 + $0x120] sm:$0xff]
        %v1532 = vld [vmem:[#allocation2 + $0x128] sm:$0xff]
        %v1533 = vld [vmem:[#allocation2 + $0x130] sm:$0xff]
        %v1534 = vld [vmem:[#allocation2 + $0x138] sm:$0xff]
        %v1535 = vld [vmem:[#allocation2 + $0x140] sm:$0xff]
        %v1536 = vld [vmem:[#allocation2 + $0x148] sm:$0xff]
        %v1537 = vld [vmem:[#allocation2 + $0x150] sm:$0xff]
        %v1538 = vld [vmem:[#allocation2 + $0x158] sm:$0xff]
        %v1539 = vld [vmem:[#allocation2 + $0x160] sm:$0xff]
        %v1540 = vld [vmem:[#allocation2 + $0x168] sm:$0xff]
        %v1541 = vld [vmem:[#allocation2 + $0x170] sm:$0xff]
        %v1542 = vld [vmem:[#allocation2 + $0x178] sm:$0xff]
        %v1543 = vld [vmem:[#allocation2 + $0x180] sm:$0xff]
        %v1544 = vld [vmem:[#allocation2 + $0x188] sm:$0xff]
        %v1545 = vld [vmem:[#allocation2 + $0x190] sm:$0xff]
        %v1546 = vld [vmem:[#allocation2 + $0x198] sm:$0xff]
        %v1547 = vld [vmem:[#allocation2 + $0x1a0] sm:$0xf]
        %v1548 = vld [vmem:[#allocation2 + $0x1a8] sm:$0xf]
        %v1549 = vld [vmem:[#allocation2 + $0x1b0] sm:$0xf]
        %v1550 = vld [vmem:[#allocation2 + $0x1b8] sm:$0xf]
        %v1551 = vld [vmem:[%s2] sm:$0xff]
        %1553 = vset.pattern.permute.xlu0 0
        %1554 = vperm.xlu0 %1553, %v1551
        %v1555 = vpop.permute.xlu0 %1554
        %vm1557 = vcmask 883712
        %v1559 = vsel %vm1557, %v1494, 0
        %vm1561 = vcmask 1043456
        %v1563 = vsel %vm1561, %v1547, 0
        %v1566 = vsel %vm1561, %v1548, 0
        %v1569 = vsel %vm1561, %v1549, 0
        %v1572 = vsel %vm1561, %v1550, 0
        %1574 = vmatpush.msra.mxu0 0.0
        %1575 = vmatpush.msra.mxu0 0.0
        %1576 = vmatpush.msra.mxu0 %v1563
        %1577 = vmatpush.msra.mxu0 %v1543
        %1578 = vmatpush.msra.mxu0 %v1539
        %1579 = vmatpush.msra.mxu0 %v1535
        %1580 = vmatpush.msra.mxu0 %v1531
        %1581 = vmatpush.msra.mxu0 %v1527
        %1582 = vmatpush.msra.mxu0 %v1523
        %1583 = vmatpush.msra.mxu0 %v1519
        %1584 = vmatpush.msra.mxu0 %v1515
        %1585 = vmatpush.msra.mxu0 %v1511
        %1586 = vmatpush.msra.mxu0 %v1507
        %1587 = vmatpush.msra.mxu0 %v1503
        %1588 = vmatpush.msra.mxu0 %v1499
        %1589 = vmatpush.msra.mxu0 %v1495
        %1590 = vmatmul.f32.gmra.mxu0 %v1559
        %v1591 = vpop.f32.mrf.mxu0
        %v1592 = vadd.f32 %v1555, %v1591
        %1593 = vdwg.mxu0
        %1594 = vmatpush.msra.mxu0 0.0
        %1595 = vmatpush.msra.mxu0 0.0
        %1596 = vmatpush.msra.mxu0 %v1566
        %1597 = vmatpush.msra.mxu0 %v1544
        %1598 = vmatpush.msra.mxu0 %v1540
        %1599 = vmatpush.msra.mxu0 %v1536
        %1600 = vmatpush.msra.mxu0 %v1532
        %1601 = vmatpush.msra.mxu0 %v1528
        %1602 = vmatpush.msra.mxu0 %v1524
        %1603 = vmatpush.msra.mxu0 %v1520
        %1604 = vmatpush.msra.mxu0 %v1516
        %1605 = vmatpush.msra.mxu0 %v1512
        %1606 = vmatpush.msra.mxu0 %v1508
        %1607 = vmatpush.msra.mxu0 %v1504
        %1608 = vmatpush.msra.mxu0 %v1500
        %1609 = vmatpush.msra.mxu0 %v1496
        %1610 = vmatmul.f32.gmra.mxu0 %v1559
        %v1611 = vpop.f32.mrf.mxu0
        %v1612 = vadd.f32 %v1555, %v1611
        %1613 = vdwg.mxu0
        %1614 = vmatpush.msra.mxu0 0.0
        %1615 = vmatpush.msra.mxu0 0.0
        %1616 = vmatpush.msra.mxu0 %v1569
        %1617 = vmatpush.msra.mxu0 %v1545
        %1618 = vmatpush.msra.mxu0 %v1541
        %1619 = vmatpush.msra.mxu0 %v1537
        %1620 = vmatpush.msra.mxu0 %v1533
        %1621 = vmatpush.msra.mxu0 %v1529
        %1622 = vmatpush.msra.mxu0 %v1525
        %1623 = vmatpush.msra.mxu0 %v1521
        %1624 = vmatpush.msra.mxu0 %v1517
        %1625 = vmatpush.msra.mxu0 %v1513
        %1626 = vmatpush.msra.mxu0 %v1509
        %1627 = vmatpush.msra.mxu0 %v1505
        %1628 = vmatpush.msra.mxu0 %v1501
        %1629 = vmatpush.msra.mxu0 %v1497
        %1630 = vmatmul.f32.gmra.mxu0 %v1559
        %v1631 = vpop.f32.mrf.mxu0
        %v1632 = vadd.f32 %v1555, %v1631
        %1633 = vdwg.mxu0
        %1634 = vmatpush.msra.mxu0 0.0
        %1635 = vmatpush.msra.mxu0 0.0
        %1636 = vmatpush.msra.mxu0 %v1572
        %1637 = vmatpush.msra.mxu0 %v1546
        %1638 = vmatpush.msra.mxu0 %v1542
        %1639 = vmatpush.msra.mxu0 %v1538
        %1640 = vmatpush.msra.mxu0 %v1534
        %1641 = vmatpush.msra.mxu0 %v1530
        %1642 = vmatpush.msra.mxu0 %v1526
        %1643 = vmatpush.msra.mxu0 %v1522
        %1644 = vmatpush.msra.mxu0 %v1518
        %1645 = vmatpush.msra.mxu0 %v1514
        %1646 = vmatpush.msra.mxu0 %v1510
        %1647 = vmatpush.msra.mxu0 %v1506
        %1648 = vmatpush.msra.mxu0 %v1502
        %1649 = vmatpush.msra.mxu0 %v1498
        %1650 = vmatmul.f32.gmra.mxu0 %v1559
        %v1651 = vpop.f32.mrf.mxu0
        %v1652 = vadd.f32 %v1555, %v1651
        %1653 = vdwg.mxu0
        %v1654 = vmax.f32 %v1592, 0.0
        %v1655 = vmax.f32 %v1612, 0.0
        %v1656 = vmax.f32 %v1632, 0.0
        %v1657 = vmax.f32 %v1652, 0.0
        %1658 = vst [vmem:[#allocation1] ss:$2 sm:$0xff] %v235
        %s1659 = scalar_lea.vmem [#allocation1], 16
        %1660 = vst [vmem:[%s1659] ss:$2 sm:$0xff] %v236
        %v1661 = vld.sshfl [vmem:[#allocation1] sm:$0xff pattern:$0x75316420]
        %v1662 = vld.sshfl [vmem:[#allocation1 + $0x8] sm:$0xff pattern:$0x75316420]
        %v1663 = vld.sshfl [vmem:[#allocation1 + $0x10] sm:$0xff pattern:$0x75316420]
        %v1664 = vld.sshfl [vmem:[#allocation1 + $0x18] sm:$0xff pattern:$0x75316420]
        %1669 = vst [vmem:[%s234] sm:$0xf] %v1661
        %1670 = vst [vmem:[%s234 + $0x8] sm:$0xf] %v1662
        %1671 = vst [vmem:[%s234 + $0x10] sm:$0xf] %v1663
        %1672 = vst [vmem:[%s234 + $0x18] sm:$0xf] %v1664
        %v1677 = vrot.slane %v1654, 4
        %v1678 = vrot.slane %v1655, 4
        %v1679 = vrot.slane %v1656, 4
        %v1680 = vrot.slane %v1657, 4
        %1685 = vst [vmem:[%s234] sm:$0xf0] %v1677
        %1686 = vst [vmem:[%s234 + $0x8] sm:$0xf0] %v1678
        %1687 = vst [vmem:[%s234 + $0x10] sm:$0xf0] %v1679
        %1688 = vst [vmem:[%s234 + $0x18] sm:$0xf0] %v1680
        %1689 = vst [vmem:[%s234 + $0x20] sm:$0xf] %v1677
        %1690 = vst [vmem:[%s234 + $0x28] sm:$0xf] %v1678
        %1691 = vst [vmem:[%s234 + $0x30] sm:$0xf] %v1679
        %1692 = vst [vmem:[%s234 + $0x38] sm:$0xf] %v1680
        %p1693 = scmp.lt.s32.totalorder %s19, 1
        %s1694 = scalar_select %p1693, %s19, 1
        %s1695 = smul.addr %s1694, 8
        %s1696 = smul.addr %s1695, 8
        %s1697 = scalar_lea.vmem %s4, %s1696
        // Predicated region
        $region45: #{tpu_custom_call.1} parent=35 // pred_check
          %p1698 = pneg %p126
        $region46: #{tpu_custom_call.1} parent=35 // pred_check_branch
          %1700 = sbr.rel (%p1698) target = $region48
        $region47: #{tpu_custom_call.1} parent=35 // pred_region
          _
        $region48: #{tpu_custom_call.1} parent=35 // pred_fallthru
          _
      $region36: #{tpu_custom_call.1} parent=5 // pred_fallthru
        _
      %p1701 = scmp.le.s32.totalorder 2, %s14
      // Predicated region
      $region49: #{tpu_custom_call.1} parent=5 // pred_check
        %p1702 = pneg %p1701
      $region50: #{tpu_custom_call.1} parent=5 // pred_check_branch
        %1704 = sbr.rel (%p1702) target = $region52
      $region51: #{tpu_custom_call.1} parent=5 // pred_region
        %s1705 = ssub.s32 %s14, 2
        // Predicated region
        $region53: #{tpu_custom_call.1} parent=51 // pred_check
          %p1706 = pneg %p132
        $region54: #{tpu_custom_call.1} parent=51 // pred_check_branch
          %1708 = sbr.rel (%p1706) target = $region56
        $region55: #{tpu_custom_call.1} parent=51 // pred_region
          %p1709 = scmp.lt.s32.totalorder %s20, 1
          %s1710 = scalar_select %p1709, %s20, 1
          %s1711 = smul.addr %s1710, 8
          %s1712 = smul.addr %s1711, 8
          %s1713 = scalar_lea.vmem %s4, %s1712
        $region56: #{tpu_custom_call.1} parent=51 // pred_fallthru
          _
      $region52: #{tpu_custom_call.1} parent=5 // pred_fallthru
        _
    $region6: #{tpu_custom_call.1} parent=1 // loop_footer
      %s18 = sadd.s32 1, %s14
    $region7: #{tpu_custom_call.1} parent=1 // loop_footer_branch
      %13 = sbr.rel target = $region3
    $region8: #{tpu_custom_call.1} parent=1 // loop_exit
      _
    %1714 = vsyncpa [#allocation4], 1
    %s1715 = scalar_lea.sflag [#allocation4], 1
    %1716 = vsyncpa %s1715, 1
    %1717 = vsyncpa [#allocation6], 1

</llo_original>
